<compile_context>
chip_gen: v7x
topology: tpu7x:2x2x1
jax: 0.10.0
libtpu: 0.0.40
codegen_flags: <defaults>
</compile_context>

<pallas_src>
import math
import jax
import jax.numpy as jnp
from jax.experimental import pallas as pl
from jax.experimental.pallas import tpu as pltpu

# ----- config (small, consistent with MPNet semantics) -----
BATCH = 2
SEQ = 8
HIDDEN = 32
NUM_HEADS = 4
HEAD_DIM = HIDDEN // NUM_HEADS
LN_EPS = 1e-12
SCALE = 1.0 / math.sqrt(HEAD_DIM)


def mpnet_attention_kernel(x_ref, wqkv_ref, bqkv_ref, wo_ref, bo_ref,
                           gamma_ref, beta_ref, out_ref):
    """One batch element per grid step: self-attention + residual + LayerNorm."""
    x = x_ref[0, :, :]                        # (S, H) f32 for this batch element

    # Output-projection accumulator, seeded with the bias; per-head contributions
    # are summed straight into it (no (NH, S, H) intermediate, no axis-0 reduce).
    o = bo_ref[...]                           # (1, H) -> broadcasts on first accumulate

    for h in range(NUM_HEADS):                # static unroll; NUM_HEADS is small
        # Per-head Q/K/V: plain 2D MXU matmuls that reuse the same x LHS (never
        # broadcast); projection/head selection is free leading-axis Ref indexing.
        q = jnp.dot(x, wqkv_ref[0, h, :, :],
                    preferred_element_type=jnp.float32) + bqkv_ref[0, h, :, :]
        k = jnp.dot(x, wqkv_ref[1, h, :, :],
                    preferred_element_type=jnp.float32) + bqkv_ref[1, h, :, :]
        v = jnp.dot(x, wqkv_ref[2, h, :, :],
                    preferred_element_type=jnp.float32) + bqkv_ref[2, h, :, :]

        # Scores (S, S) = q @ k^T via the NT dot_general form (no transpose op),
        # scaled by 1/sqrt(head_dim) exactly as in the reference.
        s = jax.lax.dot_general(q, k, (((1,), (1,)), ((), ())),
                                preferred_element_type=jnp.float32) * SCALE

        # Numerically stable softmax; normalization applied (exactly) after PV.
        m = jnp.max(s, axis=-1, keepdims=True)
        e = jnp.exp(s - m)
        denom = jnp.sum(e, axis=-1, keepdims=True)
        ctx = jnp.dot(e, v, preferred_element_type=jnp.float32) / denom    # (S, hd)

        # Head contribution of the output projection, accumulated in place.
        o = o + jnp.dot(ctx, wo_ref[h, :, :], preferred_element_type=jnp.float32)

    # Residual + LayerNorm over the hidden dim.
    y = o + x
    mu = jnp.mean(y, axis=-1, keepdims=True)
    var = jnp.mean((y - mu) * (y - mu), axis=-1, keepdims=True)
    y_norm = (y - mu) * jax.lax.rsqrt(var + LN_EPS)
    out_ref[0, :, :] = y_norm * gamma_ref[...] + beta_ref[...]


def prepare_params(params):
    """One-time parameter repacking, hoisted out of the forward path."""
    wq, bq, wk, bk, wv, bv, wo, bo, gamma, beta = params

    def head_major(w, b):
        wh = w.reshape(HIDDEN, NUM_HEADS, HEAD_DIM).transpose(1, 0, 2)   # (NH, H, hd)
        bh = b.reshape(NUM_HEADS, HEAD_DIM)[:, None, :]                  # (NH, 1, hd)
        return wh, bh

    wq_h, bq_h = head_major(wq, bq)
    wk_h, bk_h = head_major(wk, bk)
    wv_h, bv_h = head_major(wv, bv)
    wqkv = jnp.stack([wq_h, wk_h, wv_h], axis=0)      # (3, NH, H, hd): Q/K/V on leading axis
    bqkv = jnp.stack([bq_h, bk_h, bv_h], axis=0)      # (3, NH, 1, hd)
    wo_h = wo.reshape(NUM_HEADS, HEAD_DIM, HIDDEN)    # (NH, hd, H)
    return wqkv, bqkv, wo_h, bo, gamma, beta


def mpnet_attention(hidden_states, packed_params):
    wqkv, bqkv, wo_h, bo, gamma, beta = packed_params
    B, S, H = hidden_states.shape

    def const_spec(shape):
        # Constant block index: stays VMEM-resident across grid steps (no re-DMA).
        return pl.BlockSpec(shape, lambda b: (0,) * len(shape))

    return pl.pallas_call(
        mpnet_attention_kernel,
        grid=(B,),
        in_specs=[
            pl.BlockSpec((1, S, H), lambda b: (b, 0, 0)),   # activations: this batch element
            const_spec(wqkv.shape),
            const_spec(bqkv.shape),
            const_spec(wo_h.shape),
            const_spec(bo.shape),
            const_spec(gamma.shape),
            const_spec(beta.shape),
        ],
        out_specs=pl.BlockSpec((1, S, H), lambda b: (b, 0, 0)),
        out_shape=jax.ShapeDtypeStruct((B, S, H), jnp.float32),
        compiler_params=pltpu.CompilerParams(
            dimension_semantics=("parallel",)),             # batch across TCs on v7x
    )(hidden_states, wqkv, bqkv, wo_h, bo, gamma, beta)


def reference(hidden_states, params):
    """Pure-JAX reference mirroring the PyTorch forward (full-f32 matmul precision)."""
    wq, bq, wk, bk, wv, bv, wo, bo, gamma, beta = params
    B, S, H = hidden_states.shape
    P = jax.lax.Precision.HIGHEST
    x = hidden_states
    q = jnp.einsum("bsh,hd->bsd", x, wq, precision=P) + bq
    k = jnp.einsum("bsh,hd->bsd", x, wk, precision=P) + bk
    v = jnp.einsum("bsh,hd->bsd", x, wv, precision=P) + bv

    def split(t):  # (B,S,H) -> (B, nh, S, hd)
        return t.reshape(B, S, NUM_HEADS, HEAD_DIM).transpose(0, 2, 1, 3)

    qh, kh, vh = split(q), split(k), split(v)
    scores = jnp.einsum("bhqd,bhkd->bhqk", qh, kh, precision=P) / math.sqrt(HEAD_DIM)
    probs = jax.nn.softmax(scores, axis=-1)
    c = jnp.einsum("bhqk,bhkd->bhqd", probs, vh, precision=P)
    c = c.transpose(0, 2, 1, 3).reshape(B, S, H)
    o = jnp.einsum("bsh,hd->bsd", c, wo, precision=P) + bo
    y = o + x
    mu = jnp.mean(y, axis=-1, keepdims=True)
    var = jnp.mean((y - mu) ** 2, axis=-1, keepdims=True)
    y_norm = (y - mu) / jnp.sqrt(var + LN_EPS)
    return y_norm * gamma + beta


if __name__ == "__main__":
    key = jax.random.PRNGKey(0)
    keys = jax.random.split(key, 12)

    hidden_states = jax.random.normal(keys[0], (BATCH, SEQ, HIDDEN), dtype=jnp.float32)

    s = 0.05
    wq = s * jax.random.normal(keys[1], (HIDDEN, HIDDEN), dtype=jnp.float32)
    wk = s * jax.random.normal(keys[2], (HIDDEN, HIDDEN), dtype=jnp.float32)
    wv = s * jax.random.normal(keys[3], (HIDDEN, HIDDEN), dtype=jnp.float32)
    wo = s * jax.random.normal(keys[4], (HIDDEN, HIDDEN), dtype=jnp.float32)
    bq = s * jax.random.normal(keys[5], (1, HIDDEN), dtype=jnp.float32)
    bk = s * jax.random.normal(keys[6], (1, HIDDEN), dtype=jnp.float32)
    bv = s * jax.random.normal(keys[7], (1, HIDDEN), dtype=jnp.float32)
    bo = s * jax.random.normal(keys[8], (1, HIDDEN), dtype=jnp.float32)
    gamma = jnp.ones((1, HIDDEN), dtype=jnp.float32)
    beta = jnp.zeros((1, HIDDEN), dtype=jnp.float32)

    params = (wq, bq, wk, bk, wv, bv, wo, bo, gamma, beta)

    # One-time repacking (hoisted out of the forward path).
    packed = prepare_params(params)
    packed = jax.tree_util.tree_map(jax.block_until_ready, packed)

    out = mpnet_attention(hidden_states, packed)
    out = jax.block_until_ready(out)

    ref = reference(hidden_states, params)
    assert out.shape == (BATCH, SEQ, HIDDEN)
    # Exact softmax normalization (no approx reciprocal) -> tighter tolerance.
    assert jnp.allclose(out, ref, atol=1e-3, rtol=1e-3), "mismatch vs reference"

    print("KERNEL_OK")
</pallas_src>

<mosaic_0001>
module attributes {stable_mosaic.version = 11 : i64} {
  func.func @mpnet_attention_kernel(%arg0: i32, %arg1: memref<1x8x32xf32, #tpu.memory_space<vmem>>, %arg2: memref<3x4x32x8xf32, #tpu.memory_space<vmem>>, %arg3: memref<3x4x1x8xf32, #tpu.memory_space<vmem>>, %arg4: memref<4x8x32xf32, #tpu.memory_space<vmem>>, %arg5: memref<1x32xf32, #tpu.memory_space<vmem>>, %arg6: memref<1x32xf32, #tpu.memory_space<vmem>>, %arg7: memref<1x32xf32, #tpu.memory_space<vmem>>, %arg8: memref<1x8x32xf32, #tpu.memory_space<vmem>>) attributes {dimension_semantics = [#tpu.dimension_semantics<parallel>], iteration_bounds = array<i64: 2>, scalar_prefetch = 0 : i64, scratch_operands = 0 : i64, tpu.core_type = #tpu.core_type<tc>, window_params = [{transform_indices = @transform_0, window_bounds = array<i64: 1, 8, 32>}, {pipeline_mode = #tpu.pipeline_mode<synchronous>, transform_indices = @transform_1, window_bounds = array<i64: 3, 4, 32, 8>}, {pipeline_mode = #tpu.pipeline_mode<synchronous>, transform_indices = @transform_2, window_bounds = array<i64: 3, 4, 1, 8>}, {pipeline_mode = #tpu.pipeline_mode<synchronous>, transform_indices = @transform_3, window_bounds = array<i64: 4, 8, 32>}, {pipeline_mode = #tpu.pipeline_mode<synchronous>, transform_indices = @transform_4, window_bounds = array<i64: 1, 32>}, {pipeline_mode = #tpu.pipeline_mode<synchronous>, transform_indices = @transform_5, window_bounds = array<i64: 1, 32>}, {pipeline_mode = #tpu.pipeline_mode<synchronous>, transform_indices = @transform_6, window_bounds = array<i64: 1, 32>}, {transform_indices = @transform_7, window_bounds = array<i64: 1, 8, 32>}]} {
    %c0 = arith.constant 0 : index
    %c0_0 = arith.constant 0 : index
    %c0_1 = arith.constant 0 : index
    %0 = vector.load %arg1[%c0, %c0_0, %c0_1] : memref<1x8x32xf32, #tpu.memory_space<vmem>>, vector<1x8x32xf32>
    %1 = vector.shape_cast %0 : vector<1x8x32xf32> to vector<8x32xf32>
    %c0_2 = arith.constant 0 : index
    %c0_3 = arith.constant 0 : index
    %2 = vector.load %arg5[%c0_2, %c0_3] : memref<1x32xf32, #tpu.memory_space<vmem>>, vector<1x32xf32>
    %c0_4 = arith.constant 0 : index
    %c0_5 = arith.constant 0 : index
    %c0_6 = arith.constant 0 : index
    %c0_7 = arith.constant 0 : index
    %3 = vector.load %arg2[%c0_4, %c0_5, %c0_6, %c0_7] : memref<3x4x32x8xf32, #tpu.memory_space<vmem>>, vector<1x1x32x8xf32>
    %4 = vector.shape_cast %3 : vector<1x1x32x8xf32> to vector<32x8xf32>
    %cst = arith.constant dense<0.000000e+00> : vector<8x8xf32>
    %5 = tpu.matmul %1, %4, %cst {dimension_numbers = #tpu.dot_dimension_numbers<[1], [0], [0], [1], [0, 0, 1, 1], [], []>} : vector<8x32xf32>, vector<32x8xf32>, vector<8x8xf32> -> vector<8x8xf32>
    %c0_8 = arith.constant 0 : index
    %c0_9 = arith.constant 0 : index
    %c0_10 = arith.constant 0 : index
    %c0_11 = arith.constant 0 : index
    %6 = vector.load %arg3[%c0_8, %c0_9, %c0_10, %c0_11] : memref<3x4x1x8xf32, #tpu.memory_space<vmem>>, vector<1x1x1x8xf32>
    %7 = vector.shape_cast %6 : vector<1x1x1x8xf32> to vector<1x8xf32>
    %8 = vector.broadcast %7 : vector<1x8xf32> to vector<8x8xf32>
    %9 = arith.addf %5, %8 : vector<8x8xf32>
    %c1 = arith.constant 1 : index
    %c0_12 = arith.constant 0 : index
    %c0_13 = arith.constant 0 : index
    %c0_14 = arith.constant 0 : index
    %10 = vector.load %arg2[%c1, %c0_12, %c0_13, %c0_14] : memref<3x4x32x8xf32, #tpu.memory_space<vmem>>, vector<1x1x32x8xf32>
    %11 = vector.shape_cast %10 : vector<1x1x32x8xf32> to vector<32x8xf32>
    %cst_15 = arith.constant dense<0.000000e+00> : vector<8x8xf32>
    %12 = tpu.matmul %1, %11, %cst_15 {dimension_numbers = #tpu.dot_dimension_numbers<[1], [0], [0], [1], [0, 0, 1, 1], [], []>} : vector<8x32xf32>, vector<32x8xf32>, vector<8x8xf32> -> vector<8x8xf32>
    %c1_16 = arith.constant 1 : index
    %c0_17 = arith.constant 0 : index
    %c0_18 = arith.constant 0 : index
    %c0_19 = arith.constant 0 : index
    %13 = vector.load %arg3[%c1_16, %c0_17, %c0_18, %c0_19] : memref<3x4x1x8xf32, #tpu.memory_space<vmem>>, vector<1x1x1x8xf32>
    %14 = vector.shape_cast %13 : vector<1x1x1x8xf32> to vector<1x8xf32>
    %15 = vector.broadcast %14 : vector<1x8xf32> to vector<8x8xf32>
    %16 = arith.addf %12, %15 : vector<8x8xf32>
    %c2 = arith.constant 2 : index
    %c0_20 = arith.constant 0 : index
    %c0_21 = arith.constant 0 : index
    %c0_22 = arith.constant 0 : index
    %17 = vector.load %arg2[%c2, %c0_20, %c0_21, %c0_22] : memref<3x4x32x8xf32, #tpu.memory_space<vmem>>, vector<1x1x32x8xf32>
    %18 = vector.shape_cast %17 : vector<1x1x32x8xf32> to vector<32x8xf32>
    %cst_23 = arith.constant dense<0.000000e+00> : vector<8x8xf32>
    %19 = tpu.matmul %1, %18, %cst_23 {dimension_numbers = #tpu.dot_dimension_numbers<[1], [0], [0], [1], [0, 0, 1, 1], [], []>} : vector<8x32xf32>, vector<32x8xf32>, vector<8x8xf32> -> vector<8x8xf32>
    %c2_24 = arith.constant 2 : index
    %c0_25 = arith.constant 0 : index
    %c0_26 = arith.constant 0 : index
    %c0_27 = arith.constant 0 : index
    %20 = vector.load %arg3[%c2_24, %c0_25, %c0_26, %c0_27] : memref<3x4x1x8xf32, #tpu.memory_space<vmem>>, vector<1x1x1x8xf32>
    %21 = vector.shape_cast %20 : vector<1x1x1x8xf32> to vector<1x8xf32>
    %22 = vector.broadcast %21 : vector<1x8xf32> to vector<8x8xf32>
    %23 = arith.addf %19, %22 : vector<8x8xf32>
    %cst_28 = arith.constant dense<0.000000e+00> : vector<8x8xf32>
    %24 = tpu.matmul %9, %16, %cst_28 {dimension_numbers = #tpu.dot_dimension_numbers<[1], [1], [0], [0], [0, 0, 1, 0], [], []>} : vector<8x8xf32>, vector<8x8xf32>, vector<8x8xf32> -> vector<8x8xf32>
    %cst_29 = arith.constant 0.353553385 : f32
    %25 = vector.broadcast %cst_29 : f32 to vector<8x8xf32>
    %26 = arith.mulf %24, %25 : vector<8x8xf32>
    %cst_30 = arith.constant dense<0xFF800000> : vector<8xf32>
    %27 = vector.multi_reduction <maximumf>, %26, %cst_30 [1] : vector<8x8xf32> to vector<8xf32>
    %28 = vector.shape_cast %27 : vector<8xf32> to vector<8x1xf32>
    %29 = vector.broadcast %28 : vector<8x1xf32> to vector<8x8xf32>
    %30 = arith.subf %26, %29 : vector<8x8xf32>
    %31 = math.exp %30 : vector<8x8xf32>
    %cst_31 = arith.constant dense<0.000000e+00> : vector<8xf32>
    %32 = vector.multi_reduction <add>, %31, %cst_31 [1] : vector<8x8xf32> to vector<8xf32>
    %33 = vector.shape_cast %32 : vector<8xf32> to vector<8x1xf32>
    %cst_32 = arith.constant dense<0.000000e+00> : vector<8x8xf32>
    %34 = tpu.matmul %31, %23, %cst_32 {dimension_numbers = #tpu.dot_dimension_numbers<[1], [0], [0], [1], [0, 0, 1, 1], [], []>} : vector<8x8xf32>, vector<8x8xf32>, vector<8x8xf32> -> vector<8x8xf32>
    %35 = vector.broadcast %33 : vector<8x1xf32> to vector<8x8xf32>
    %36 = arith.divf %34, %35 : vector<8x8xf32>
    %c0_33 = arith.constant 0 : index
    %c0_34 = arith.constant 0 : index
    %c0_35 = arith.constant 0 : index
    %37 = vector.load %arg4[%c0_33, %c0_34, %c0_35] : memref<4x8x32xf32, #tpu.memory_space<vmem>>, vector<1x8x32xf32>
    %38 = vector.shape_cast %37 : vector<1x8x32xf32> to vector<8x32xf32>
    %cst_36 = arith.constant dense<0.000000e+00> : vector<8x32xf32>
    %39 = tpu.matmul %36, %38, %cst_36 {dimension_numbers = #tpu.dot_dimension_numbers<[1], [0], [0], [1], [0, 0, 1, 1], [], []>} : vector<8x8xf32>, vector<8x32xf32>, vector<8x32xf32> -> vector<8x32xf32>
    %40 = vector.broadcast %2 : vector<1x32xf32> to vector<8x32xf32>
    %41 = arith.addf %40, %39 : vector<8x32xf32>
    %c0_37 = arith.constant 0 : index
    %c1_38 = arith.constant 1 : index
    %c0_39 = arith.constant 0 : index
    %c0_40 = arith.constant 0 : index
    %42 = vector.load %arg2[%c0_37, %c1_38, %c0_39, %c0_40] : memref<3x4x32x8xf32, #tpu.memory_space<vmem>>, vector<1x1x32x8xf32>
    %43 = vector.shape_cast %42 : vector<1x1x32x8xf32> to vector<32x8xf32>
    %cst_41 = arith.constant dense<0.000000e+00> : vector<8x8xf32>
    %44 = tpu.matmul %1, %43, %cst_41 {dimension_numbers = #tpu.dot_dimension_numbers<[1], [0], [0], [1], [0, 0, 1, 1], [], []>} : vector<8x32xf32>, vector<32x8xf32>, vector<8x8xf32> -> vector<8x8xf32>
    %c0_42 = arith.constant 0 : index
    %c1_43 = arith.constant 1 : index
    %c0_44 = arith.constant 0 : index
    %c0_45 = arith.constant 0 : index
    %45 = vector.load %arg3[%c0_42, %c1_43, %c0_44, %c0_45] : memref<3x4x1x8xf32, #tpu.memory_space<vmem>>, vector<1x1x1x8xf32>
    %46 = vector.shape_cast %45 : vector<1x1x1x8xf32> to vector<1x8xf32>
    %47 = vector.broadcast %46 : vector<1x8xf32> to vector<8x8xf32>
    %48 = arith.addf %44, %47 : vector<8x8xf32>
    %c1_46 = arith.constant 1 : index
    %c1_47 = arith.constant 1 : index
    %c0_48 = arith.constant 0 : index
    %c0_49 = arith.constant 0 : index
    %49 = vector.load %arg2[%c1_46, %c1_47, %c0_48, %c0_49] : memref<3x4x32x8xf32, #tpu.memory_space<vmem>>, vector<1x1x32x8xf32>
    %50 = vector.shape_cast %49 : vector<1x1x32x8xf32> to vector<32x8xf32>
    %cst_50 = arith.constant dense<0.000000e+00> : vector<8x8xf32>
    %51 = tpu.matmul %1, %50, %cst_50 {dimension_numbers = #tpu.dot_dimension_numbers<[1], [0], [0], [1], [0, 0, 1, 1], [], []>} : vector<8x32xf32>, vector<32x8xf32>, vector<8x8xf32> -> vector<8x8xf32>
    %c1_51 = arith.constant 1 : index
    %c1_52 = arith.constant 1 : index
    %c0_53 = arith.constant 0 : index
    %c0_54 = arith.constant 0 : index
    %52 = vector.load %arg3[%c1_51, %c1_52, %c0_53, %c0_54] : memref<3x4x1x8xf32, #tpu.memory_space<vmem>>, vector<1x1x1x8xf32>
    %53 = vector.shape_cast %52 : vector<1x1x1x8xf32> to vector<1x8xf32>
    %54 = vector.broadcast %53 : vector<1x8xf32> to vector<8x8xf32>
    %55 = arith.addf %51, %54 : vector<8x8xf32>
    %c2_55 = arith.constant 2 : index
    %c1_56 = arith.constant 1 : index
    %c0_57 = arith.constant 0 : index
    %c0_58 = arith.constant 0 : index
    %56 = vector.load %arg2[%c2_55, %c1_56, %c0_57, %c0_58] : memref<3x4x32x8xf32, #tpu.memory_space<vmem>>, vector<1x1x32x8xf32>
    %57 = vector.shape_cast %56 : vector<1x1x32x8xf32> to vector<32x8xf32>
    %cst_59 = arith.constant dense<0.000000e+00> : vector<8x8xf32>
    %58 = tpu.matmul %1, %57, %cst_59 {dimension_numbers = #tpu.dot_dimension_numbers<[1], [0], [0], [1], [0, 0, 1, 1], [], []>} : vector<8x32xf32>, vector<32x8xf32>, vector<8x8xf32> -> vector<8x8xf32>
    %c2_60 = arith.constant 2 : index
    %c1_61 = arith.constant 1 : index
    %c0_62 = arith.constant 0 : index
    %c0_63 = arith.constant 0 : index
    %59 = vector.load %arg3[%c2_60, %c1_61, %c0_62, %c0_63] : memref<3x4x1x8xf32, #tpu.memory_space<vmem>>, vector<1x1x1x8xf32>
    %60 = vector.shape_cast %59 : vector<1x1x1x8xf32> to vector<1x8xf32>
    %61 = vector.broadcast %60 : vector<1x8xf32> to vector<8x8xf32>
    %62 = arith.addf %58, %61 : vector<8x8xf32>
    %cst_64 = arith.constant dense<0.000000e+00> : vector<8x8xf32>
    %63 = tpu.matmul %48, %55, %cst_64 {dimension_numbers = #tpu.dot_dimension_numbers<[1], [1], [0], [0], [0, 0, 1, 0], [], []>} : vector<8x8xf32>, vector<8x8xf32>, vector<8x8xf32> -> vector<8x8xf32>
    %cst_65 = arith.constant 0.353553385 : f32
    %64 = vector.broadcast %cst_65 : f32 to vector<8x8xf32>
    %65 = arith.mulf %63, %64 : vector<8x8xf32>
    %cst_66 = arith.constant dense<0xFF800000> : vector<8xf32>
    %66 = vector.multi_reduction <maximumf>, %65, %cst_66 [1] : vector<8x8xf32> to vector<8xf32>
    %67 = vector.shape_cast %66 : vector<8xf32> to vector<8x1xf32>
    %68 = vector.broadcast %67 : vector<8x1xf32> to vector<8x8xf32>
    %69 = arith.subf %65, %68 : vector<8x8xf32>
    %70 = math.exp %69 : vector<8x8xf32>
    %cst_67 = arith.constant dense<0.000000e+00> : vector<8xf32>
    %71 = vector.multi_reduction <add>, %70, %cst_67 [1] : vector<8x8xf32> to vector<8xf32>
    %72 = vector.shape_cast %71 : vector<8xf32> to vector<8x1xf32>
    %cst_68 = arith.constant dense<0.000000e+00> : vector<8x8xf32>
    %73 = tpu.matmul %70, %62, %cst_68 {dimension_numbers = #tpu.dot_dimension_numbers<[1], [0], [0], [1], [0, 0, 1, 1], [], []>} : vector<8x8xf32>, vector<8x8xf32>, vector<8x8xf32> -> vector<8x8xf32>
    %74 = vector.broadcast %72 : vector<8x1xf32> to vector<8x8xf32>
    %75 = arith.divf %73, %74 : vector<8x8xf32>
    %c1_69 = arith.constant 1 : index
    %c0_70 = arith.constant 0 : index
    %c0_71 = arith.constant 0 : index
    %76 = vector.load %arg4[%c1_69, %c0_70, %c0_71] : memref<4x8x32xf32, #tpu.memory_space<vmem>>, vector<1x8x32xf32>
    %77 = vector.shape_cast %76 : vector<1x8x32xf32> to vector<8x32xf32>
    %cst_72 = arith.constant dense<0.000000e+00> : vector<8x32xf32>
    %78 = tpu.matmul %75, %77, %cst_72 {dimension_numbers = #tpu.dot_dimension_numbers<[1], [0], [0], [1], [0, 0, 1, 1], [], []>} : vector<8x8xf32>, vector<8x32xf32>, vector<8x32xf32> -> vector<8x32xf32>
    %79 = arith.addf %41, %78 : vector<8x32xf32>
    %c0_73 = arith.constant 0 : index
    %c2_74 = arith.constant 2 : index
    %c0_75 = arith.constant 0 : index
    %c0_76 = arith.constant 0 : index
    %80 = vector.load %arg2[%c0_73, %c2_74, %c0_75, %c0_76] : memref<3x4x32x8xf32, #tpu.memory_space<vmem>>, vector<1x1x32x8xf32>
    %81 = vector.shape_cast %80 : vector<1x1x32x8xf32> to vector<32x8xf32>
    %cst_77 = arith.constant dense<0.000000e+00> : vector<8x8xf32>
    %82 = tpu.matmul %1, %81, %cst_77 {dimension_numbers = #tpu.dot_dimension_numbers<[1], [0], [0], [1], [0, 0, 1, 1], [], []>} : vector<8x32xf32>, vector<32x8xf32>, vector<8x8xf32> -> vector<8x8xf32>
    %c0_78 = arith.constant 0 : index
    %c2_79 = arith.constant 2 : index
    %c0_80 = arith.constant 0 : index
    %c0_81 = arith.constant 0 : index
    %83 = vector.load %arg3[%c0_78, %c2_79, %c0_80, %c0_81] : memref<3x4x1x8xf32, #tpu.memory_space<vmem>>, vector<1x1x1x8xf32>
    %84 = vector.shape_cast %83 : vector<1x1x1x8xf32> to vector<1x8xf32>
    %85 = vector.broadcast %84 : vector<1x8xf32> to vector<8x8xf32>
    %86 = arith.addf %82, %85 : vector<8x8xf32>
    %c1_82 = arith.constant 1 : index
    %c2_83 = arith.constant 2 : index
    %c0_84 = arith.constant 0 : index
    %c0_85 = arith.constant 0 : index
    %87 = vector.load %arg2[%c1_82, %c2_83, %c0_84, %c0_85] : memref<3x4x32x8xf32, #tpu.memory_space<vmem>>, vector<1x1x32x8xf32>
    %88 = vector.shape_cast %87 : vector<1x1x32x8xf32> to vector<32x8xf32>
    %cst_86 = arith.constant dense<0.000000e+00> : vector<8x8xf32>
    %89 = tpu.matmul %1, %88, %cst_86 {dimension_numbers = #tpu.dot_dimension_numbers<[1], [0], [0], [1], [0, 0, 1, 1], [], []>} : vector<8x32xf32>, vector<32x8xf32>, vector<8x8xf32> -> vector<8x8xf32>
    %c1_87 = arith.constant 1 : index
    %c2_88 = arith.constant 2 : index
    %c0_89 = arith.constant 0 : index
    %c0_90 = arith.constant 0 : index
    %90 = vector.load %arg3[%c1_87, %c2_88, %c0_89, %c0_90] : memref<3x4x1x8xf32, #tpu.memory_space<vmem>>, vector<1x1x1x8xf32>
    %91 = vector.shape_cast %90 : vector<1x1x1x8xf32> to vector<1x8xf32>
    %92 = vector.broadcast %91 : vector<1x8xf32> to vector<8x8xf32>
    %93 = arith.addf %89, %92 : vector<8x8xf32>
    %c2_91 = arith.constant 2 : index
    %c2_92 = arith.constant 2 : index
    %c0_93 = arith.constant 0 : index
    %c0_94 = arith.constant 0 : index
    %94 = vector.load %arg2[%c2_91, %c2_92, %c0_93, %c0_94] : memref<3x4x32x8xf32, #tpu.memory_space<vmem>>, vector<1x1x32x8xf32>
    %95 = vector.shape_cast %94 : vector<1x1x32x8xf32> to vector<32x8xf32>
    %cst_95 = arith.constant dense<0.000000e+00> : vector<8x8xf32>
    %96 = tpu.matmul %1, %95, %cst_95 {dimension_numbers = #tpu.dot_dimension_numbers<[1], [0], [0], [1], [0, 0, 1, 1], [], []>} : vector<8x32xf32>, vector<32x8xf32>, vector<8x8xf32> -> vector<8x8xf32>
    %c2_96 = arith.constant 2 : index
    %c2_97 = arith.constant 2 : index
    %c0_98 = arith.constant 0 : index
    %c0_99 = arith.constant 0 : index
    %97 = vector.load %arg3[%c2_96, %c2_97, %c0_98, %c0_99] : memref<3x4x1x8xf32, #tpu.memory_space<vmem>>, vector<1x1x1x8xf32>
    %98 = vector.shape_cast %97 : vector<1x1x1x8xf32> to vector<1x8xf32>
    %99 = vector.broadcast %98 : vector<1x8xf32> to vector<8x8xf32>
    %100 = arith.addf %96, %99 : vector<8x8xf32>
    %cst_100 = arith.constant dense<0.000000e+00> : vector<8x8xf32>
    %101 = tpu.matmul %86, %93, %cst_100 {dimension_numbers = #tpu.dot_dimension_numbers<[1], [1], [0], [0], [0, 0, 1, 0], [], []>} : vector<8x8xf32>, vector<8x8xf32>, vector<8x8xf32> -> vector<8x8xf32>
    %cst_101 = arith.constant 0.353553385 : f32
    %102 = vector.broadcast %cst_101 : f32 to vector<8x8xf32>
    %103 = arith.mulf %101, %102 : vector<8x8xf32>
    %cst_102 = arith.constant dense<0xFF800000> : vector<8xf32>
    %104 = vector.multi_reduction <maximumf>, %103, %cst_102 [1] : vector<8x8xf32> to vector<8xf32>
    %105 = vector.shape_cast %104 : vector<8xf32> to vector<8x1xf32>
    %106 = vector.broadcast %105 : vector<8x1xf32> to vector<8x8xf32>
    %107 = arith.subf %103, %106 : vector<8x8xf32>
    %108 = math.exp %107 : vector<8x8xf32>
    %cst_103 = arith.constant dense<0.000000e+00> : vector<8xf32>
    %109 = vector.multi_reduction <add>, %108, %cst_103 [1] : vector<8x8xf32> to vector<8xf32>
    %110 = vector.shape_cast %109 : vector<8xf32> to vector<8x1xf32>
    %cst_104 = arith.constant dense<0.000000e+00> : vector<8x8xf32>
    %111 = tpu.matmul %108, %100, %cst_104 {dimension_numbers = #tpu.dot_dimension_numbers<[1], [0], [0], [1], [0, 0, 1, 1], [], []>} : vector<8x8xf32>, vector<8x8xf32>, vector<8x8xf32> -> vector<8x8xf32>
    %112 = vector.broadcast %110 : vector<8x1xf32> to vector<8x8xf32>
    %113 = arith.divf %111, %112 : vector<8x8xf32>
    %c2_105 = arith.constant 2 : index
    %c0_106 = arith.constant 0 : index
    %c0_107 = arith.constant 0 : index
    %114 = vector.load %arg4[%c2_105, %c0_106, %c0_107] : memref<4x8x32xf32, #tpu.memory_space<vmem>>, vector<1x8x32xf32>
    %115 = vector.shape_cast %114 : vector<1x8x32xf32> to vector<8x32xf32>
    %cst_108 = arith.constant dense<0.000000e+00> : vector<8x32xf32>
    %116 = tpu.matmul %113, %115, %cst_108 {dimension_numbers = #tpu.dot_dimension_numbers<[1], [0], [0], [1], [0, 0, 1, 1], [], []>} : vector<8x8xf32>, vector<8x32xf32>, vector<8x32xf32> -> vector<8x32xf32>
    %117 = arith.addf %79, %116 : vector<8x32xf32>
    %c0_109 = arith.constant 0 : index
    %c3 = arith.constant 3 : index
    %c0_110 = arith.constant 0 : index
    %c0_111 = arith.constant 0 : index
    %118 = vector.load %arg2[%c0_109, %c3, %c0_110, %c0_111] : memref<3x4x32x8xf32, #tpu.memory_space<vmem>>, vector<1x1x32x8xf32>
    %119 = vector.shape_cast %118 : vector<1x1x32x8xf32> to vector<32x8xf32>
    %cst_112 = arith.constant dense<0.000000e+00> : vector<8x8xf32>
    %120 = tpu.matmul %1, %119, %cst_112 {dimension_numbers = #tpu.dot_dimension_numbers<[1], [0], [0], [1], [0, 0, 1, 1], [], []>} : vector<8x32xf32>, vector<32x8xf32>, vector<8x8xf32> -> vector<8x8xf32>
    %c0_113 = arith.constant 0 : index
    %c3_114 = arith.constant 3 : index
    %c0_115 = arith.constant 0 : index
    %c0_116 = arith.constant 0 : index
    %121 = vector.load %arg3[%c0_113, %c3_114, %c0_115, %c0_116] : memref<3x4x1x8xf32, #tpu.memory_space<vmem>>, vector<1x1x1x8xf32>
    %122 = vector.shape_cast %121 : vector<1x1x1x8xf32> to vector<1x8xf32>
    %123 = vector.broadcast %122 : vector<1x8xf32> to vector<8x8xf32>
    %124 = arith.addf %120, %123 : vector<8x8xf32>
    %c1_117 = arith.constant 1 : index
    %c3_118 = arith.constant 3 : index
    %c0_119 = arith.constant 0 : index
    %c0_120 = arith.constant 0 : index
    %125 = vector.load %arg2[%c1_117, %c3_118, %c0_119, %c0_120] : memref<3x4x32x8xf32, #tpu.memory_space<vmem>>, vector<1x1x32x8xf32>
    %126 = vector.shape_cast %125 : vector<1x1x32x8xf32> to vector<32x8xf32>
    %cst_121 = arith.constant dense<0.000000e+00> : vector<8x8xf32>
    %127 = tpu.matmul %1, %126, %cst_121 {dimension_numbers = #tpu.dot_dimension_numbers<[1], [0], [0], [1], [0, 0, 1, 1], [], []>} : vector<8x32xf32>, vector<32x8xf32>, vector<8x8xf32> -> vector<8x8xf32>
    %c1_122 = arith.constant 1 : index
    %c3_123 = arith.constant 3 : index
    %c0_124 = arith.constant 0 : index
    %c0_125 = arith.constant 0 : index
    %128 = vector.load %arg3[%c1_122, %c3_123, %c0_124, %c0_125] : memref<3x4x1x8xf32, #tpu.memory_space<vmem>>, vector<1x1x1x8xf32>
    %129 = vector.shape_cast %128 : vector<1x1x1x8xf32> to vector<1x8xf32>
    %130 = vector.broadcast %129 : vector<1x8xf32> to vector<8x8xf32>
    %131 = arith.addf %127, %130 : vector<8x8xf32>
    %c2_126 = arith.constant 2 : index
    %c3_127 = arith.constant 3 : index
    %c0_128 = arith.constant 0 : index
    %c0_129 = arith.constant 0 : index
    %132 = vector.load %arg2[%c2_126, %c3_127, %c0_128, %c0_129] : memref<3x4x32x8xf32, #tpu.memory_space<vmem>>, vector<1x1x32x8xf32>
    %133 = vector.shape_cast %132 : vector<1x1x32x8xf32> to vector<32x8xf32>
    %cst_130 = arith.constant dense<0.000000e+00> : vector<8x8xf32>
    %134 = tpu.matmul %1, %133, %cst_130 {dimension_numbers = #tpu.dot_dimension_numbers<[1], [0], [0], [1], [0, 0, 1, 1], [], []>} : vector<8x32xf32>, vector<32x8xf32>, vector<8x8xf32> -> vector<8x8xf32>
    %c2_131 = arith.constant 2 : index
    %c3_132 = arith.constant 3 : index
    %c0_133 = arith.constant 0 : index
    %c0_134 = arith.constant 0 : index
    %135 = vector.load %arg3[%c2_131, %c3_132, %c0_133, %c0_134] : memref<3x4x1x8xf32, #tpu.memory_space<vmem>>, vector<1x1x1x8xf32>
    %136 = vector.shape_cast %135 : vector<1x1x1x8xf32> to vector<1x8xf32>
    %137 = vector.broadcast %136 : vector<1x8xf32> to vector<8x8xf32>
    %138 = arith.addf %134, %137 : vector<8x8xf32>
    %cst_135 = arith.constant dense<0.000000e+00> : vector<8x8xf32>
    %139 = tpu.matmul %124, %131, %cst_135 {dimension_numbers = #tpu.dot_dimension_numbers<[1], [1], [0], [0], [0, 0, 1, 0], [], []>} : vector<8x8xf32>, vector<8x8xf32>, vector<8x8xf32> -> vector<8x8xf32>
    %cst_136 = arith.constant 0.353553385 : f32
    %140 = vector.broadcast %cst_136 : f32 to vector<8x8xf32>
    %141 = arith.mulf %139, %140 : vector<8x8xf32>
    %cst_137 = arith.constant dense<0xFF800000> : vector<8xf32>
    %142 = vector.multi_reduction <maximumf>, %141, %cst_137 [1] : vector<8x8xf32> to vector<8xf32>
    %143 = vector.shape_cast %142 : vector<8xf32> to vector<8x1xf32>
    %144 = vector.broadcast %143 : vector<8x1xf32> to vector<8x8xf32>
    %145 = arith.subf %141, %144 : vector<8x8xf32>
    %146 = math.exp %145 : vector<8x8xf32>
    %cst_138 = arith.constant dense<0.000000e+00> : vector<8xf32>
    %147 = vector.multi_reduction <add>, %146, %cst_138 [1] : vector<8x8xf32> to vector<8xf32>
    %148 = vector.shape_cast %147 : vector<8xf32> to vector<8x1xf32>
    %cst_139 = arith.constant dense<0.000000e+00> : vector<8x8xf32>
    %149 = tpu.matmul %146, %138, %cst_139 {dimension_numbers = #tpu.dot_dimension_numbers<[1], [0], [0], [1], [0, 0, 1, 1], [], []>} : vector<8x8xf32>, vector<8x8xf32>, vector<8x8xf32> -> vector<8x8xf32>
    %150 = vector.broadcast %148 : vector<8x1xf32> to vector<8x8xf32>
    %151 = arith.divf %149, %150 : vector<8x8xf32>
    %c3_140 = arith.constant 3 : index
    %c0_141 = arith.constant 0 : index
    %c0_142 = arith.constant 0 : index
    %152 = vector.load %arg4[%c3_140, %c0_141, %c0_142] : memref<4x8x32xf32, #tpu.memory_space<vmem>>, vector<1x8x32xf32>
    %153 = vector.shape_cast %152 : vector<1x8x32xf32> to vector<8x32xf32>
    %cst_143 = arith.constant dense<0.000000e+00> : vector<8x32xf32>
    %154 = tpu.matmul %151, %153, %cst_143 {dimension_numbers = #tpu.dot_dimension_numbers<[1], [0], [0], [1], [0, 0, 1, 1], [], []>} : vector<8x8xf32>, vector<8x32xf32>, vector<8x32xf32> -> vector<8x32xf32>
    %155 = arith.addf %117, %154 : vector<8x32xf32>
    %156 = arith.addf %155, %1 : vector<8x32xf32>
    %cst_144 = arith.constant dense<0.000000e+00> : vector<8xf32>
    %157 = vector.multi_reduction <add>, %156, %cst_144 [1] : vector<8x32xf32> to vector<8xf32>
    %158 = vector.shape_cast %157 : vector<8xf32> to vector<8x1xf32>
    %cst_145 = arith.constant 3.200000e+01 : f32
    %159 = vector.broadcast %cst_145 : f32 to vector<8x1xf32>
    %160 = arith.divf %158, %159 : vector<8x1xf32>
    %161 = vector.broadcast %160 : vector<8x1xf32> to vector<8x32xf32>
    %162 = arith.subf %156, %161 : vector<8x32xf32>
    %163 = vector.broadcast %160 : vector<8x1xf32> to vector<8x32xf32>
    %164 = arith.subf %156, %163 : vector<8x32xf32>
    %165 = arith.mulf %162, %164 : vector<8x32xf32>
    %cst_146 = arith.constant dense<0.000000e+00> : vector<8xf32>
    %166 = vector.multi_reduction <add>, %165, %cst_146 [1] : vector<8x32xf32> to vector<8xf32>
    %167 = vector.shape_cast %166 : vector<8xf32> to vector<8x1xf32>
    %cst_147 = arith.constant 3.200000e+01 : f32
    %168 = vector.broadcast %cst_147 : f32 to vector<8x1xf32>
    %169 = arith.divf %167, %168 : vector<8x1xf32>
    %170 = vector.broadcast %160 : vector<8x1xf32> to vector<8x32xf32>
    %171 = arith.subf %156, %170 : vector<8x32xf32>
    %cst_148 = arith.constant 9.99999996E-13 : f32
    %172 = vector.broadcast %cst_148 : f32 to vector<8x1xf32>
    %173 = arith.addf %169, %172 : vector<8x1xf32>
    %174 = math.rsqrt %173 : vector<8x1xf32>
    %175 = vector.broadcast %174 : vector<8x1xf32> to vector<8x32xf32>
    %176 = arith.mulf %171, %175 : vector<8x32xf32>
    %c0_149 = arith.constant 0 : index
    %c0_150 = arith.constant 0 : index
    %177 = vector.load %arg6[%c0_149, %c0_150] : memref<1x32xf32, #tpu.memory_space<vmem>>, vector<1x32xf32>
    %178 = vector.broadcast %177 : vector<1x32xf32> to vector<8x32xf32>
    %179 = arith.mulf %176, %178 : vector<8x32xf32>
    %c0_151 = arith.constant 0 : index
    %c0_152 = arith.constant 0 : index
    %180 = vector.load %arg7[%c0_151, %c0_152] : memref<1x32xf32, #tpu.memory_space<vmem>>, vector<1x32xf32>
    %181 = vector.broadcast %180 : vector<1x32xf32> to vector<8x32xf32>
    %182 = arith.addf %179, %181 : vector<8x32xf32>
    %c0_153 = arith.constant 0 : index
    %c0_154 = arith.constant 0 : index
    %c0_155 = arith.constant 0 : index
    %183 = vector.load %arg8[%c0_153, %c0_154, %c0_155] : memref<1x8x32xf32, #tpu.memory_space<vmem>>, vector<1x8x32xf32>
    %184 = vector.shape_cast %183 : vector<1x8x32xf32> to vector<8x32xf32>
    %185 = vector.shape_cast %182 : vector<8x32xf32> to vector<1x8x32xf32>
    tpu.vector_store %arg8[%c0_153, %c0_154, %c0_155], %185 {strides = array<i32>} : memref<1x8x32xf32, #tpu.memory_space<vmem>>, vector<1x8x32xf32>,
    return
  }
  func.func @transform_0(%arg0: i32) -> (i32, i32, i32) {
    %c0_i32 = arith.constant 0 : i32
    %c0_i32_0 = arith.constant 0 : i32
    %c0_i32_1 = arith.constant 0 : i32
    return %arg0, %c0_i32, %c0_i32_0 : i32, i32, i32
  }
  func.func @transform_1(%arg0: i32) -> (i32, i32, i32, i32) {
    %c0_i32 = arith.constant 0 : i32
    %c0_i32_0 = arith.constant 0 : i32
    %c0_i32_1 = arith.constant 0 : i32
    %c0_i32_2 = arith.constant 0 : i32
    %c0_i32_3 = arith.constant 0 : i32
    return %c0_i32, %c0_i32_0, %c0_i32_1, %c0_i32_2 : i32, i32, i32, i32
  }
  func.func @transform_2(%arg0: i32) -> (i32, i32, i32, i32) {
    %c0_i32 = arith.constant 0 : i32
    %c0_i32_0 = arith.constant 0 : i32
    %c0_i32_1 = arith.constant 0 : i32
    %c0_i32_2 = arith.constant 0 : i32
    %c0_i32_3 = arith.constant 0 : i32
    return %c0_i32, %c0_i32_0, %c0_i32_1, %c0_i32_2 : i32, i32, i32, i32
  }
  func.func @transform_3(%arg0: i32) -> (i32, i32, i32) {
    %c0_i32 = arith.constant 0 : i32
    %c0_i32_0 = arith.constant 0 : i32
    %c0_i32_1 = arith.constant 0 : i32
    %c0_i32_2 = arith.constant 0 : i32
    return %c0_i32, %c0_i32_0, %c0_i32_1 : i32, i32, i32
  }
  func.func @transform_4(%arg0: i32) -> (i32, i32) {
    %c0_i32 = arith.constant 0 : i32
    %c0_i32_0 = arith.constant 0 : i32
    %c0_i32_1 = arith.constant 0 : i32
    return %c0_i32, %c0_i32_0 : i32, i32
  }
  func.func @transform_5(%arg0: i32) -> (i32, i32) {
    %c0_i32 = arith.constant 0 : i32
    %c0_i32_0 = arith.constant 0 : i32
    %c0_i32_1 = arith.constant 0 : i32
    return %c0_i32, %c0_i32_0 : i32, i32
  }
  func.func @transform_6(%arg0: i32) -> (i32, i32) {
    %c0_i32 = arith.constant 0 : i32
    %c0_i32_0 = arith.constant 0 : i32
    %c0_i32_1 = arith.constant 0 : i32
    return %c0_i32, %c0_i32_0 : i32, i32
  }
  func.func @transform_7(%arg0: i32) -> (i32, i32, i32) {
    %c0_i32 = arith.constant 0 : i32
    %c0_i32_0 = arith.constant 0 : i32
    %c0_i32_1 = arith.constant 0 : i32
    return %arg0, %c0_i32, %c0_i32_0 : i32, i32, i32
  }
}

</mosaic_0001>

<llo_original>
// kernel: tpu_custom_call.1
$region0: #{tpu_custom_call.1}
  #allocation0 [shape = 'u32[]', space=smem, size = 0x4, offset = 0x4, fixed_abs, tag = 'smem constant byte address 0x4 - core index']
  #allocation1 [shape = 'u32[144,128]{1,0:T(1,128)}', space=vmem, size = 0x12000, scoped, tag = 'internal scratch']
  %s0 = inlined_call_operand.vmem [shape: f32[2,8,32], index: 0, kind: input, shape index: {}]
  %s1 = inlined_call_operand.vmem [shape: f32[3,4,32,8], index: 1, kind: input, shape index: {}]
  %s2 = inlined_call_operand.vmem [shape: f32[3,4,1,8], index: 2, kind: input, shape index: {}]
  %s3 = inlined_call_operand.vmem [shape: f32[4,8,32], index: 3, kind: input, shape index: {}]
  %s4 = inlined_call_operand.vmem [shape: f32[1,32], index: 4, kind: input, shape index: {}]
  %s5 = inlined_call_operand.vmem [shape: f32[1,32], index: 5, kind: input, shape index: {}]
  %s6 = inlined_call_operand.vmem [shape: f32[1,32], index: 6, kind: input, shape index: {}]
  %s7 = inlined_call_operand.hbm [shape: f32[2,8,32], index: 7, kind: output, shape index: {}]
  %s8 = sld [smem:[#allocation0]]
  $region61: #{tpu_custom_call.1} parent=0
    _
  %s10 = ssub.s32 1, %s8
  %s11 = scalar_select 0, %s10, %s8
  $region1: #{tpu_custom_call.1} parent=0
    #allocation2 [shape = 'u8[8192]{0}', space=vmem, size = 0x2000, scoped, tag = 'output window, operand 0']
    #allocation3 [shape = 's32[2]{0}', space=sflag, size = 0x8, scoped, tag = 'scoped memory for tpu_custom_call.1']
    %12 = vsyncpa [#allocation3], 0
    %s13 = scalar_lea.sflag [#allocation3], 1
    %14 = vsyncpa %s13, 0
    loop: start=0, step=1, limit=4
    $region2: #{tpu_custom_call.1} parent=1 // loop_pre_header
      _
    $region3: #{tpu_custom_call.1} parent=1 // loop_header
      %s16 = sphi 0, %s20
      %p17 = scmp.ge.s32.totalorder %s16, 4
      %s26 = sphi 0, %s28
      %s29 = sphi 0, %s26
      %s30 = sphi 0, %s29
      %s46 = sphi 0, %s30
      %s50 = sphi 0, %s50
      %s52 = sphi 0, %s50
      %s53 = sphi 0, %s52
      %s67 = sphi 0, %s53
      %s71 = sphi 0, %s71
      %s73 = sphi 0, %s71
      %s74 = sphi 0, %s73
      %s88 = sphi 0, %s74
      %s92 = sphi 0, %s92
      %s94 = sphi 0, %s92
      %s95 = sphi 0, %s94
      %s109 = sphi 0, %s95
      %s113 = sphi 0, %s113
      %s115 = sphi 0, %s113
      %s116 = sphi 0, %s115
      %s130 = sphi 0, %s116
      %s134 = sphi 0, %s134
      %s136 = sphi 0, %s134
      %s137 = sphi 0, %s136
      %s151 = sphi 0, %s137
      %s155 = sphi 0, %s155
      %s157 = sphi 0, %s155
      %s158 = sphi 0, %s157
      %s172 = sphi 0, %s158
      %s178 = sphi 0, %s180
      %s181 = sphi 0, %s178
      %s182 = sphi 0, %s181
      %s198 = sphi 0, %s182
    $region4: #{tpu_custom_call.1} parent=1 // loop_header_branch
      %19 = sbr.rel (%p17) target = $region8
    $region5: #{tpu_custom_call.1} parent=1 // loop_body
      %s21 = ssub.s32 %s16, 1
      %s22 = ssub.s32 %s16, 2
      %s23 = sadd.s32 %s16, 1
      %s24 = ssub.s32 %s16, %s23
      %p25 = scmp.eq.s32.totalorder %s24, 0
      %s27 = sadd.s32 %s26, 1
      %s28 = scalar_select %p25, %s26, %s27
      %p31 = pneg %p25
      %p32 = scmp.eq.s32.totalorder %s16, 1
      %p33 = por %p31, %p32
      %p34 = scmp.ne.s32.totalorder %s26, %s29
      %p35 = scmp.eq.s32.totalorder %s16, 0
      %p36 = por %p34, %p35
      %p37 = scmp.ne.s32.totalorder %s26, %s29
      %p38 = scmp.eq.s32.totalorder %s21, 1
      %p39 = por %p37, %p38
      %p40 = scmp.ne.s32.totalorder %s29, %s30
      %p41 = scmp.eq.s32.totalorder %s21, 0
      %p42 = por %p40, %p41
      %p43 = scmp.ne.s32.totalorder %s29, %s30
      %p44 = scmp.eq.s32.totalorder %s22, 1
      %p45 = por %p43, %p44
      %p47 = scmp.ne.s32.totalorder %s30, %s46
      %p48 = scmp.eq.s32.totalorder %s22, 0
      %p49 = por %p47, %p48
      %s51 = sadd.s32 %s50, 1
      %p54 = scmp.eq.s32.totalorder %s16, 1
      %p55 = scmp.ne.s32.totalorder %s50, %s52
      %p56 = scmp.eq.s32.totalorder %s16, 0
      %p57 = por %p55, %p56
      %p58 = scmp.ne.s32.totalorder %s50, %s52
      %p59 = scmp.eq.s32.totalorder %s21, 1
      %p60 = por %p58, %p59
      %p61 = scmp.ne.s32.totalorder %s52, %s53
      %p62 = scmp.eq.s32.totalorder %s21, 0
      %p63 = por %p61, %p62
      %p64 = scmp.ne.s32.totalorder %s52, %s53
      %p65 = scmp.eq.s32.totalorder %s22, 1
      %p66 = por %p64, %p65
      %p68 = scmp.ne.s32.totalorder %s53, %s67
      %p69 = scmp.eq.s32.totalorder %s22, 0
      %p70 = por %p68, %p69
      %s72 = sadd.s32 %s71, 1
      %p75 = scmp.eq.s32.totalorder %s16, 1
      %p76 = scmp.ne.s32.totalorder %s71, %s73
      %p77 = scmp.eq.s32.totalorder %s16, 0
      %p78 = por %p76, %p77
      %p79 = scmp.ne.s32.totalorder %s71, %s73
      %p80 = scmp.eq.s32.totalorder %s21, 1
      %p81 = por %p79, %p80
      %p82 = scmp.ne.s32.totalorder %s73, %s74
      %p83 = scmp.eq.s32.totalorder %s21, 0
      %p84 = por %p82, %p83
      %p85 = scmp.ne.s32.totalorder %s73, %s74
      %p86 = scmp.eq.s32.totalorder %s22, 1
      %p87 = por %p85, %p86
      %p89 = scmp.ne.s32.totalorder %s74, %s88
      %p90 = scmp.eq.s32.totalorder %s22, 0
      %p91 = por %p89, %p90
      %s93 = sadd.s32 %s92, 1
      %p96 = scmp.eq.s32.totalorder %s16, 1
      %p97 = scmp.ne.s32.totalorder %s92, %s94
      %p98 = scmp.eq.s32.totalorder %s16, 0
      %p99 = por %p97, %p98
      %p100 = scmp.ne.s32.totalorder %s92, %s94
      %p101 = scmp.eq.s32.totalorder %s21, 1
      %p102 = por %p100, %p101
      %p103 = scmp.ne.s32.totalorder %s94, %s95
      %p104 = scmp.eq.s32.totalorder %s21, 0
      %p105 = por %p103, %p104
      %p106 = scmp.ne.s32.totalorder %s94, %s95
      %p107 = scmp.eq.s32.totalorder %s22, 1
      %p108 = por %p106, %p107
      %p110 = scmp.ne.s32.totalorder %s95, %s109
      %p111 = scmp.eq.s32.totalorder %s22, 0
      %p112 = por %p110, %p111
      %s114 = sadd.s32 %s113, 1
      %p117 = scmp.eq.s32.totalorder %s16, 1
      %p118 = scmp.ne.s32.totalorder %s113, %s115
      %p119 = scmp.eq.s32.totalorder %s16, 0
      %p120 = por %p118, %p119
      %p121 = scmp.ne.s32.totalorder %s113, %s115
      %p122 = scmp.eq.s32.totalorder %s21, 1
      %p123 = por %p121, %p122
      %p124 = scmp.ne.s32.totalorder %s115, %s116
      %p125 = scmp.eq.s32.totalorder %s21, 0
      %p126 = por %p124, %p125
      %p127 = scmp.ne.s32.totalorder %s115, %s116
      %p128 = scmp.eq.s32.totalorder %s22, 1
      %p129 = por %p127, %p128
      %p131 = scmp.ne.s32.totalorder %s116, %s130
      %p132 = scmp.eq.s32.totalorder %s22, 0
      %p133 = por %p131, %p132
      %s135 = sadd.s32 %s134, 1
      %p138 = scmp.eq.s32.totalorder %s16, 1
      %p139 = scmp.ne.s32.totalorder %s134, %s136
      %p140 = scmp.eq.s32.totalorder %s16, 0
      %p141 = por %p139, %p140
      %p142 = scmp.ne.s32.totalorder %s134, %s136
      %p143 = scmp.eq.s32.totalorder %s21, 1
      %p144 = por %p142, %p143
      %p145 = scmp.ne.s32.totalorder %s136, %s137
      %p146 = scmp.eq.s32.totalorder %s21, 0
      %p147 = por %p145, %p146
      %p148 = scmp.ne.s32.totalorder %s136, %s137
      %p149 = scmp.eq.s32.totalorder %s22, 1
      %p150 = por %p148, %p149
      %p152 = scmp.ne.s32.totalorder %s137, %s151
      %p153 = scmp.eq.s32.totalorder %s22, 0
      %p154 = por %p152, %p153
      %s156 = sadd.s32 %s155, 1
      %p159 = scmp.eq.s32.totalorder %s16, 1
      %p160 = scmp.ne.s32.totalorder %s155, %s157
      %p161 = scmp.eq.s32.totalorder %s16, 0
      %p162 = por %p160, %p161
      %p163 = scmp.ne.s32.totalorder %s155, %s157
      %p164 = scmp.eq.s32.totalorder %s21, 1
      %p165 = por %p163, %p164
      %p166 = scmp.ne.s32.totalorder %s157, %s158
      %p167 = scmp.eq.s32.totalorder %s21, 0
      %p168 = por %p166, %p167
      %p169 = scmp.ne.s32.totalorder %s157, %s158
      %p170 = scmp.eq.s32.totalorder %s22, 1
      %p171 = por %p169, %p170
      %p173 = scmp.ne.s32.totalorder %s158, %s172
      %p174 = scmp.eq.s32.totalorder %s22, 0
      %p175 = por %p173, %p174
      %s176 = ssub.s32 %s16, %s23
      %p177 = scmp.eq.s32.totalorder %s176, 0
      %s179 = sadd.s32 %s178, 1
      %s180 = scalar_select %p177, %s178, %s179
      %p183 = pneg %p177
      %p184 = scmp.eq.s32.totalorder %s16, 1
      %p185 = por %p183, %p184
      %p186 = scmp.ne.s32.totalorder %s178, %s181
      %p187 = scmp.eq.s32.totalorder %s16, 0
      %p188 = por %p186, %p187
      %p189 = scmp.ne.s32.totalorder %s178, %s181
      %p190 = scmp.eq.s32.totalorder %s21, 1
      %p191 = por %p189, %p190
      %p192 = scmp.ne.s32.totalorder %s181, %s182
      %p193 = scmp.eq.s32.totalorder %s21, 0
      %p194 = por %p192, %p193
      %p195 = scmp.ne.s32.totalorder %s181, %s182
      %p196 = scmp.eq.s32.totalorder %s22, 1
      %p197 = por %p195, %p196
      %p199 = scmp.ne.s32.totalorder %s182, %s198
      %p200 = scmp.eq.s32.totalorder %s22, 0
      %p201 = por %p199, %p200
      %p202 = scmp.le.s32.totalorder 1, %s16
      %p203 = scmp.lt.s32.totalorder %s16, 3
      %p204 = pnand %p202, %p203
      %p205 = pneg %p204
      // Predicated region
      $region9: #{tpu_custom_call.1} parent=5 // pred_check
        _
      $region10: #{tpu_custom_call.1} parent=5 // pred_check_branch
        %207 = sbr.rel (%p204) target = $region12
      $region11: #{tpu_custom_call.1} parent=5 // pred_region
        %s208 = ssub.s32 %s16, 1
        // Predicated region
        $region13: #{tpu_custom_call.1} parent=11 // pred_check
          %p209 = pneg %p63
        $region14: #{tpu_custom_call.1} parent=11 // pred_check_branch
          %211 = sbr.rel (%p209) target = $region16
        $region15: #{tpu_custom_call.1} parent=11 // pred_region
          _
        $region16: #{tpu_custom_call.1} parent=11 // pred_fallthru
          _
        // Predicated region
        $region17: #{tpu_custom_call.1} parent=11 // pred_check
          %p212 = pneg %p84
        $region18: #{tpu_custom_call.1} parent=11 // pred_check_branch
          %214 = sbr.rel (%p212) target = $region20
        $region19: #{tpu_custom_call.1} parent=11 // pred_region
          _
        $region20: #{tpu_custom_call.1} parent=11 // pred_fallthru
          _
        // Predicated region
        $region21: #{tpu_custom_call.1} parent=11 // pred_check
          %p215 = pneg %p105
        $region22: #{tpu_custom_call.1} parent=11 // pred_check_branch
          %217 = sbr.rel (%p215) target = $region24
        $region23: #{tpu_custom_call.1} parent=11 // pred_region
          _
        $region24: #{tpu_custom_call.1} parent=11 // pred_fallthru
          _
        // Predicated region
        $region25: #{tpu_custom_call.1} parent=11 // pred_check
          %p218 = pneg %p126
        $region26: #{tpu_custom_call.1} parent=11 // pred_check_branch
          %220 = sbr.rel (%p218) target = $region28
        $region27: #{tpu_custom_call.1} parent=11 // pred_region
          _
        $region28: #{tpu_custom_call.1} parent=11 // pred_fallthru
          _
        // Predicated region
        $region29: #{tpu_custom_call.1} parent=11 // pred_check
          %p221 = pneg %p147
        $region30: #{tpu_custom_call.1} parent=11 // pred_check_branch
          %223 = sbr.rel (%p221) target = $region32
        $region31: #{tpu_custom_call.1} parent=11 // pred_region
          _
        $region32: #{tpu_custom_call.1} parent=11 // pred_fallthru
          _
        // Predicated region
        $region33: #{tpu_custom_call.1} parent=11 // pred_check
          %p224 = pneg %p168
        $region34: #{tpu_custom_call.1} parent=11 // pred_check_branch
          %226 = sbr.rel (%p224) target = $region36
        $region35: #{tpu_custom_call.1} parent=11 // pred_region
          _
        $region36: #{tpu_custom_call.1} parent=11 // pred_fallthru
          _
      $region12: #{tpu_custom_call.1} parent=5 // pred_fallthru
        _
      %p227 = scmp.lt.s32.totalorder %s16, 2
      // Predicated region
      $region37: #{tpu_custom_call.1} parent=5 // pred_check
        %p228 = pneg %p227
      $region38: #{tpu_custom_call.1} parent=5 // pred_check_branch
        %230 = sbr.rel (%p228) target = $region40
      $region39: #{tpu_custom_call.1} parent=5 // pred_region
        // Predicated region
        $region41: #{tpu_custom_call.1} parent=39 // pred_check
          %p231 = pneg %p36
        $region42: #{tpu_custom_call.1} parent=39 // pred_check_branch
          %233 = sbr.rel (%p231) target = $region44
        $region43: #{tpu_custom_call.1} parent=39 // pred_region
          %p234 = scmp.lt.s32.totalorder %s16, 1
          %s235 = scalar_select %p234, %s16, 1
          %s236 = smul.addr %s235, 8
          %s237 = scalar_lea.vmem %s0, %s236
        $region44: #{tpu_custom_call.1} parent=39 // pred_fallthru
          _
      $region40: #{tpu_custom_call.1} parent=5 // pred_fallthru
        _
      %p238 = scmp.le.s32.totalorder 1, %s16
      %p239 = scmp.lt.s32.totalorder %s16, 3
      %p240 = pnand %p238, %p239
      %p241 = pneg %p240
      // Predicated region
      $region45: #{tpu_custom_call.1} parent=5 // pred_check
        _
      $region46: #{tpu_custom_call.1} parent=5 // pred_check_branch
        %243 = sbr.rel (%p240) target = $region48
      $region47: #{tpu_custom_call.1} parent=5 // pred_region
        %s244 = ssub.s32 %s16, 1
        %p245 = scmp.lt.s32.totalorder %s21, 1
        %s246 = scalar_select %p245, %s21, 1
        %s247 = smul.addr %s246, 8
        %s248 = scalar_lea.vmem %s0, %s247
        %p249 = pneg %p42
        %p250 = pneg %p39
        %p251 = pneg %p63
        %p252 = pneg %p60
        %p253 = pneg %p84
        %p254 = pneg %p81
        %p255 = pneg %p105
        %p256 = pneg %p102
        %p257 = pneg %p126
        %p258 = pneg %p123
        %p259 = pneg %p147
        %p260 = pneg %p144
        %p261 = pneg %p168
        %p262 = pneg %p165
        %p263 = pneg %p194
        %p264 = pneg %p191
        %s265 = sand.u32 %s181, 1
        %s266 = scalar_lea.sflag [#allocation3], %s265
        %s267 = sand.u32 %s181, 1
        %s268 = smul.addr %s267, 8
        %s269 = scalar_lea.vmem [#allocation2], %s268
        %p270 = scmp.lt.s32.totalorder %s21, 1
        %s271 = scalar_select %p270, %s21, 1
        %s272 = smul.addr %s271, 8
        %s273 = scalar_lea.vmem %s0, %s272
        %v274 = vld [vmem:[%s273] sm:$0xff]
        %v275 = vld [vmem:[%s4] sm:$0x1]
        %v276 = vld [vmem:[%s1] sm:$0xff]
        %v277 = vld [vmem:[%s1 + $0x8] sm:$0xff]
        %v278 = vld [vmem:[%s1 + $0x10] sm:$0xff]
        %v279 = vld [vmem:[%s1 + $0x18] sm:$0xff]
        %v280 = vld [vmem:[%s2] sm:$0x1]
        %v282 = vlaneseq
        %v283 = vshrl.u32 %v282, 7
        %v284 = vsub.s32 0, %v283
        %v285 = vrot.slane %v280, %v284
        %vm287 = vcmask 261120
        %v289 = vsel %vm287, %v274, 0
        %291 = vmatprep.subr.mxu0 0.0
        %292 = vmatpush1.msra.mxu0 %v276
        %293 = vmatprep.subr.mxu0 0.0
        %294 = vmatpush1.msra.mxu0 %v277
        %295 = vmatprep.subr.mxu0 0.0
        %296 = vmatpush1.msra.mxu0 %v278
        %297 = vmatprep.subr.mxu0 0.0
        %298 = vmatpush1.msra.mxu0 %v279
        %299 = vmatprep.subr.mxu0 0.0
        %300 = vmatpush1.msra.mxu0 0.0
        %301 = vmatprep.subr.mxu0 0.0
        %302 = vmatpush1.msra.mxu0 0.0
        %303 = vmatprep.subr.mxu0 0.0
        %304 = vmatpush1.msra.mxu0 0.0
        %305 = vmatprep.subr.mxu0 0.0
        %306 = vmatpush1.msra.mxu0 0.0
        %307 = vmatprep.subr.mxu0 0.0
        %308 = vmatpush1.msra.mxu0 0.0
        %309 = vmatprep.subr.mxu0 0.0
        %310 = vmatpush1.msra.mxu0 0.0
        %311 = vmatprep.subr.mxu0 0.0
        %312 = vmatpush1.msra.mxu0 0.0
        %313 = vmatprep.subr.mxu0 0.0
        %314 = vmatpush1.msra.mxu0 0.0
        %315 = vmatprep.subr.mxu0 0.0
        %316 = vmatpush1.msra.mxu0 0.0
        %317 = vmatprep.subr.mxu0 0.0
        %318 = vmatpush1.msra.mxu0 0.0
        %319 = vmatprep.subr.mxu0 0.0
        %320 = vmatpush1.msra.mxu0 0.0
        %321 = vmatprep.subr.mxu0 0.0
        %322 = vmatpush1.msra.mxu0 0.0
        %323 = vmatprep.subr.mxu0 0.0
        %324 = vmatpush1.msra.mxu0 0.0
        %325 = vmatprep.subr.mxu0 0.0
        %326 = vmatpush1.msra.mxu0 0.0
        %327 = vmatprep.subr.mxu0 0.0
        %328 = vmatpush1.msra.mxu0 0.0
        %329 = vmatprep.subr.mxu0 0.0
        %330 = vmatpush1.msra.mxu0 0.0
        %331 = vmatprep.subr.mxu0 0.0
        %332 = vmatpush1.msra.mxu0 0.0
        %333 = vmatprep.subr.mxu0 0.0
        %334 = vmatpush1.msra.mxu0 0.0
        %335 = vmatprep.subr.mxu0 0.0
        %336 = vmatpush1.msra.mxu0 0.0
        %337 = vmatprep.subr.mxu0 0.0
        %338 = vmatpush1.msra.mxu0 0.0
        %339 = vmatprep.subr.mxu0 0.0
        %340 = vmatpush1.msra.mxu0 0.0
        %341 = vmatprep.subr.mxu0 0.0
        %342 = vmatpush1.msra.mxu0 0.0
        %343 = vmatprep.subr.mxu0 0.0
        %344 = vmatpush1.msra.mxu0 0.0
        %345 = vmatprep.subr.mxu0 0.0
        %346 = vmatpush1.msra.mxu0 0.0
        %347 = vmatprep.subr.mxu0 0.0
        %348 = vmatpush1.msra.mxu0 0.0
        %349 = vmatprep.subr.mxu0 0.0
        %350 = vmatpush1.msra.mxu0 0.0
        %351 = vmatprep.subr.mxu0 0.0
        %352 = vmatpush1.msra.mxu0 0.0
        %353 = vmatprep.subr.mxu0 0.0
        %354 = vmatpush1.msra.mxu0 0.0
        %355 = vmatprep.mubr.f32.mxu0 0.0
        %356 = vmatmul.mubr.f32.gmra.mrb[0].mxu0 %v289
        %v357 = vpop.f32.mrb[0].mxu0
        %v358 = vadd.f32 %v285, %v357
        %v359 = vpop.f32.mrb[0].mxu0
        %360 = vdwg.mxu0
        %s361 = scalar_lea.vmem %s1, 128
        %v362 = vld [vmem:[%s361] sm:$0xff]
        %v363 = vld [vmem:[%s361 + $0x8] sm:$0xff]
        %v364 = vld [vmem:[%s361 + $0x10] sm:$0xff]
        %v365 = vld [vmem:[%s361 + $0x18] sm:$0xff]
        %s366 = scalar_lea.vmem %s2, 4
        %v367 = vld [vmem:[%s366] sm:$0x1]
        %v369 = vlaneseq
        %v370 = vshrl.u32 %v369, 7
        %v371 = vsub.s32 0, %v370
        %v372 = vrot.slane %v367, %v371
        %374 = vmatprep.subr.mxu0 0.0
        %375 = vmatpush1.msra.mxu0 %v362
        %376 = vmatprep.subr.mxu0 0.0
        %377 = vmatpush1.msra.mxu0 %v363
        %378 = vmatprep.subr.mxu0 0.0
        %379 = vmatpush1.msra.mxu0 %v364
        %380 = vmatprep.subr.mxu0 0.0
        %381 = vmatpush1.msra.mxu0 %v365
        %382 = vmatprep.subr.mxu0 0.0
        %383 = vmatpush1.msra.mxu0 0.0
        %384 = vmatprep.subr.mxu0 0.0
        %385 = vmatpush1.msra.mxu0 0.0
        %386 = vmatprep.subr.mxu0 0.0
        %387 = vmatpush1.msra.mxu0 0.0
        %388 = vmatprep.subr.mxu0 0.0
        %389 = vmatpush1.msra.mxu0 0.0
        %390 = vmatprep.subr.mxu0 0.0
        %391 = vmatpush1.msra.mxu0 0.0
        %392 = vmatprep.subr.mxu0 0.0
        %393 = vmatpush1.msra.mxu0 0.0
        %394 = vmatprep.subr.mxu0 0.0
        %395 = vmatpush1.msra.mxu0 0.0
        %396 = vmatprep.subr.mxu0 0.0
        %397 = vmatpush1.msra.mxu0 0.0
        %398 = vmatprep.subr.mxu0 0.0
        %399 = vmatpush1.msra.mxu0 0.0
        %400 = vmatprep.subr.mxu0 0.0
        %401 = vmatpush1.msra.mxu0 0.0
        %402 = vmatprep.subr.mxu0 0.0
        %403 = vmatpush1.msra.mxu0 0.0
        %404 = vmatprep.subr.mxu0 0.0
        %405 = vmatpush1.msra.mxu0 0.0
        %406 = vmatprep.subr.mxu0 0.0
        %407 = vmatpush1.msra.mxu0 0.0
        %408 = vmatprep.subr.mxu0 0.0
        %409 = vmatpush1.msra.mxu0 0.0
        %410 = vmatprep.subr.mxu0 0.0
        %411 = vmatpush1.msra.mxu0 0.0
        %412 = vmatprep.subr.mxu0 0.0
        %413 = vmatpush1.msra.mxu0 0.0
        %414 = vmatprep.subr.mxu0 0.0
        %415 = vmatpush1.msra.mxu0 0.0
        %416 = vmatprep.subr.mxu0 0.0
        %417 = vmatpush1.msra.mxu0 0.0
        %418 = vmatprep.subr.mxu0 0.0
        %419 = vmatpush1.msra.mxu0 0.0
        %420 = vmatprep.subr.mxu0 0.0
        %421 = vmatpush1.msra.mxu0 0.0
        %422 = vmatprep.subr.mxu0 0.0
        %423 = vmatpush1.msra.mxu0 0.0
        %424 = vmatprep.subr.mxu0 0.0
        %425 = vmatpush1.msra.mxu0 0.0
        %426 = vmatprep.subr.mxu0 0.0
        %427 = vmatpush1.msra.mxu0 0.0
        %428 = vmatprep.subr.mxu0 0.0
        %429 = vmatpush1.msra.mxu0 0.0
        %430 = vmatprep.subr.mxu0 0.0
        %431 = vmatpush1.msra.mxu0 0.0
        %432 = vmatprep.subr.mxu0 0.0
        %433 = vmatpush1.msra.mxu0 0.0
        %434 = vmatprep.subr.mxu0 0.0
        %435 = vmatpush1.msra.mxu0 0.0
        %436 = vmatprep.subr.mxu0 0.0
        %437 = vmatpush1.msra.mxu0 0.0
        %438 = vmatprep.mubr.f32.mxu0 0.0
        %439 = vmatmul.mubr.f32.gmra.mrb[0].mxu0 %v289
        %v440 = vpop.f32.mrb[0].mxu0
        %v441 = vadd.f32 %v372, %v440
        %v442 = vpop.f32.mrb[0].mxu0
        %443 = vdwg.mxu0
        %s444 = scalar_lea.vmem %s1, 256
        %v445 = vld [vmem:[%s444] sm:$0xff]
        %v446 = vld [vmem:[%s444 + $0x8] sm:$0xff]
        %v447 = vld [vmem:[%s444 + $0x10] sm:$0xff]
        %v448 = vld [vmem:[%s444 + $0x18] sm:$0xff]
        %s449 = scalar_lea.vmem %s2, 8
        %v450 = vld [vmem:[%s449] sm:$0x1]
        %v452 = vlaneseq
        %v453 = vshrl.u32 %v452, 7
        %v454 = vsub.s32 0, %v453
        %v455 = vrot.slane %v450, %v454
        %457 = vmatprep.subr.mxu0 0.0
        %458 = vmatpush1.msra.mxu0 %v445
        %459 = vmatprep.subr.mxu0 0.0
        %460 = vmatpush1.msra.mxu0 %v446
        %461 = vmatprep.subr.mxu0 0.0
        %462 = vmatpush1.msra.mxu0 %v447
        %463 = vmatprep.subr.mxu0 0.0
        %464 = vmatpush1.msra.mxu0 %v448
        %465 = vmatprep.subr.mxu0 0.0
        %466 = vmatpush1.msra.mxu0 0.0
        %467 = vmatprep.subr.mxu0 0.0
        %468 = vmatpush1.msra.mxu0 0.0
        %469 = vmatprep.subr.mxu0 0.0
        %470 = vmatpush1.msra.mxu0 0.0
        %471 = vmatprep.subr.mxu0 0.0
        %472 = vmatpush1.msra.mxu0 0.0
        %473 = vmatprep.subr.mxu0 0.0
        %474 = vmatpush1.msra.mxu0 0.0
        %475 = vmatprep.subr.mxu0 0.0
        %476 = vmatpush1.msra.mxu0 0.0
        %477 = vmatprep.subr.mxu0 0.0
        %478 = vmatpush1.msra.mxu0 0.0
        %479 = vmatprep.subr.mxu0 0.0
        %480 = vmatpush1.msra.mxu0 0.0
        %481 = vmatprep.subr.mxu0 0.0
        %482 = vmatpush1.msra.mxu0 0.0
        %483 = vmatprep.subr.mxu0 0.0
        %484 = vmatpush1.msra.mxu0 0.0
        %485 = vmatprep.subr.mxu0 0.0
        %486 = vmatpush1.msra.mxu0 0.0
        %487 = vmatprep.subr.mxu0 0.0
        %488 = vmatpush1.msra.mxu0 0.0
        %489 = vmatprep.subr.mxu0 0.0
        %490 = vmatpush1.msra.mxu0 0.0
        %491 = vmatprep.subr.mxu0 0.0
        %492 = vmatpush1.msra.mxu0 0.0
        %493 = vmatprep.subr.mxu0 0.0
        %494 = vmatpush1.msra.mxu0 0.0
        %495 = vmatprep.subr.mxu0 0.0
        %496 = vmatpush1.msra.mxu0 0.0
        %497 = vmatprep.subr.mxu0 0.0
        %498 = vmatpush1.msra.mxu0 0.0
        %499 = vmatprep.subr.mxu0 0.0
        %500 = vmatpush1.msra.mxu0 0.0
        %501 = vmatprep.subr.mxu0 0.0
        %502 = vmatpush1.msra.mxu0 0.0
        %503 = vmatprep.subr.mxu0 0.0
        %504 = vmatpush1.msra.mxu0 0.0
        %505 = vmatprep.subr.mxu0 0.0
        %506 = vmatpush1.msra.mxu0 0.0
        %507 = vmatprep.subr.mxu0 0.0
        %508 = vmatpush1.msra.mxu0 0.0
        %509 = vmatprep.subr.mxu0 0.0
        %510 = vmatpush1.msra.mxu0 0.0
        %511 = vmatprep.subr.mxu0 0.0
        %512 = vmatpush1.msra.mxu0 0.0
        %513 = vmatprep.subr.mxu0 0.0
        %514 = vmatpush1.msra.mxu0 0.0
        %515 = vmatprep.subr.mxu0 0.0
        %516 = vmatpush1.msra.mxu0 0.0
        %517 = vmatprep.subr.mxu0 0.0
        %518 = vmatpush1.msra.mxu0 0.0
        %519 = vmatprep.subr.mxu0 0.0
        %520 = vmatpush1.msra.mxu0 0.0
        %521 = vmatprep.mubr.f32.mxu0 0.0
        %522 = vmatmul.mubr.f32.gmra.mrb[0].mxu0 %v289
        %v523 = vpop.f32.mrb[0].mxu0
        %v524 = vadd.f32 %v455, %v523
        %v525 = vpop.f32.mrb[0].mxu0
        %526 = vdwg.mxu0
        %vm527 = vcmask 64512
        %v529 = vsel %vm527, %v358, 0
        %v532 = vsel %vm527, %v441, 0
        %534 = vmatprep.subr.mxu0 0.0
        %535 = vmatpush1.xpose.msra.mxu0 %v532
        %536 = vmatprep.subr.mxu0 0.0
        %537 = vmatpush1.xpose.msra.mxu0 0.0
        %538 = vmatprep.subr.mxu0 0.0
        %539 = vmatpush1.xpose.msra.mxu0 0.0
        %540 = vmatprep.subr.mxu0 0.0
        %541 = vmatpush1.xpose.msra.mxu0 0.0
        %542 = vmatprep.subr.mxu0 0.0
        %543 = vmatpush1.xpose.msra.mxu0 0.0
        %544 = vmatprep.subr.mxu0 0.0
        %545 = vmatpush1.xpose.msra.mxu0 0.0
        %546 = vmatprep.subr.mxu0 0.0
        %547 = vmatpush1.xpose.msra.mxu0 0.0
        %548 = vmatprep.subr.mxu0 0.0
        %549 = vmatpush1.xpose.msra.mxu0 0.0
        %550 = vmatprep.subr.mxu0 0.0
        %551 = vmatpush1.xpose.msra.mxu0 0.0
        %552 = vmatprep.subr.mxu0 0.0
        %553 = vmatpush1.xpose.msra.mxu0 0.0
        %554 = vmatprep.subr.mxu0 0.0
        %555 = vmatpush1.xpose.msra.mxu0 0.0
        %556 = vmatprep.subr.mxu0 0.0
        %557 = vmatpush1.xpose.msra.mxu0 0.0
        %558 = vmatprep.subr.mxu0 0.0
        %559 = vmatpush1.xpose.msra.mxu0 0.0
        %560 = vmatprep.subr.mxu0 0.0
        %561 = vmatpush1.xpose.msra.mxu0 0.0
        %562 = vmatprep.subr.mxu0 0.0
        %563 = vmatpush1.xpose.msra.mxu0 0.0
        %564 = vmatprep.subr.mxu0 0.0
        %565 = vmatpush1.xpose.msra.mxu0 0.0
        %566 = vmatprep.subr.mxu0 0.0
        %567 = vmatpush1.xpose.msra.mxu0 0.0
        %568 = vmatprep.subr.mxu0 0.0
        %569 = vmatpush1.xpose.msra.mxu0 0.0
        %570 = vmatprep.subr.mxu0 0.0
        %571 = vmatpush1.xpose.msra.mxu0 0.0
        %572 = vmatprep.subr.mxu0 0.0
        %573 = vmatpush1.xpose.msra.mxu0 0.0
        %574 = vmatprep.subr.mxu0 0.0
        %575 = vmatpush1.xpose.msra.mxu0 0.0
        %576 = vmatprep.subr.mxu0 0.0
        %577 = vmatpush1.xpose.msra.mxu0 0.0
        %578 = vmatprep.subr.mxu0 0.0
        %579 = vmatpush1.xpose.msra.mxu0 0.0
        %580 = vmatprep.subr.mxu0 0.0
        %581 = vmatpush1.xpose.msra.mxu0 0.0
        %582 = vmatprep.subr.mxu0 0.0
        %583 = vmatpush1.xpose.msra.mxu0 0.0
        %584 = vmatprep.subr.mxu0 0.0
        %585 = vmatpush1.xpose.msra.mxu0 0.0
        %586 = vmatprep.subr.mxu0 0.0
        %587 = vmatpush1.xpose.msra.mxu0 0.0
        %588 = vmatprep.subr.mxu0 0.0
        %589 = vmatpush1.xpose.msra.mxu0 0.0
        %590 = vmatprep.subr.mxu0 0.0
        %591 = vmatpush1.xpose.msra.mxu0 0.0
        %592 = vmatprep.subr.mxu0 0.0
        %593 = vmatpush1.xpose.msra.mxu0 0.0
        %594 = vmatprep.subr.mxu0 0.0
        %595 = vmatpush1.xpose.msra.mxu0 0.0
        %596 = vmatprep.subr.mxu0 0.0
        %597 = vmatpush1.xpose.msra.mxu0 0.0
        %598 = vmatprep.mubr.f32.mxu0 0.0
        %599 = vmatmul.mubr.f32.gmra.mrb[0].mxu0 %v529
        %v600 = vpop.f32.mrb[0].mxu0
        %v601 = vadd.f32 0.0, %v600
        %v602 = vpop.f32.mrb[0].mxu0
        %603 = vdwg.mxu0
        %v604 = vmul.f32 %v601, 0.35355338
        %v605 = vsel %vm527, %v604, -inf
        %606 = vmax.xlane.f32.xlu0 %v605
        %v607 = vpop.xlane.xlu0 %606
        %v608 = vsub.f32 %v604, %v607
        %v609 = vmul.f32 %v608, 1.442695
        %v610 = vpow.pop %v609
        %v611 = vsel %vm527, %v610, 0.0
        %612 = vadd.xlane.f32.xlu0 %v611
        %v613 = vpop.xlane.xlu0 %612
        %v615 = vsel %vm527, %v610, 0
        %617 = vmatprep.subr.mxu0 0.0
        %618 = vmatpush1.msra.mxu0 %v524
        %619 = vmatprep.subr.mxu0 0.0
        %620 = vmatpush1.msra.mxu0 0.0
        %621 = vmatprep.subr.mxu0 0.0
        %622 = vmatpush1.msra.mxu0 0.0
        %623 = vmatprep.subr.mxu0 0.0
        %624 = vmatpush1.msra.mxu0 0.0
        %625 = vmatprep.subr.mxu0 0.0
        %626 = vmatpush1.msra.mxu0 0.0
        %627 = vmatprep.subr.mxu0 0.0
        %628 = vmatpush1.msra.mxu0 0.0
        %629 = vmatprep.subr.mxu0 0.0
        %630 = vmatpush1.msra.mxu0 0.0
        %631 = vmatprep.subr.mxu0 0.0
        %632 = vmatpush1.msra.mxu0 0.0
        %633 = vmatprep.subr.mxu0 0.0
        %634 = vmatpush1.msra.mxu0 0.0
        %635 = vmatprep.subr.mxu0 0.0
        %636 = vmatpush1.msra.mxu0 0.0
        %637 = vmatprep.subr.mxu0 0.0
        %638 = vmatpush1.msra.mxu0 0.0
        %639 = vmatprep.subr.mxu0 0.0
        %640 = vmatpush1.msra.mxu0 0.0
        %641 = vmatprep.subr.mxu0 0.0
        %642 = vmatpush1.msra.mxu0 0.0
        %643 = vmatprep.subr.mxu0 0.0
        %644 = vmatpush1.msra.mxu0 0.0
        %645 = vmatprep.subr.mxu0 0.0
        %646 = vmatpush1.msra.mxu0 0.0
        %647 = vmatprep.subr.mxu0 0.0
        %648 = vmatpush1.msra.mxu0 0.0
        %649 = vmatprep.subr.mxu0 0.0
        %650 = vmatpush1.msra.mxu0 0.0
        %651 = vmatprep.subr.mxu0 0.0
        %652 = vmatpush1.msra.mxu0 0.0
        %653 = vmatprep.subr.mxu0 0.0
        %654 = vmatpush1.msra.mxu0 0.0
        %655 = vmatprep.subr.mxu0 0.0
        %656 = vmatpush1.msra.mxu0 0.0
        %657 = vmatprep.subr.mxu0 0.0
        %658 = vmatpush1.msra.mxu0 0.0
        %659 = vmatprep.subr.mxu0 0.0
        %660 = vmatpush1.msra.mxu0 0.0
        %661 = vmatprep.subr.mxu0 0.0
        %662 = vmatpush1.msra.mxu0 0.0
        %663 = vmatprep.subr.mxu0 0.0
        %664 = vmatpush1.msra.mxu0 0.0
        %665 = vmatprep.subr.mxu0 0.0
        %666 = vmatpush1.msra.mxu0 0.0
        %667 = vmatprep.subr.mxu0 0.0
        %668 = vmatpush1.msra.mxu0 0.0
        %669 = vmatprep.subr.mxu0 0.0
        %670 = vmatpush1.msra.mxu0 0.0
        %671 = vmatprep.subr.mxu0 0.0
        %672 = vmatpush1.msra.mxu0 0.0
        %673 = vmatprep.subr.mxu0 0.0
        %674 = vmatpush1.msra.mxu0 0.0
        %675 = vmatprep.subr.mxu0 0.0
        %676 = vmatpush1.msra.mxu0 0.0
        %677 = vmatprep.subr.mxu0 0.0
        %678 = vmatpush1.msra.mxu0 0.0
        %679 = vmatprep.subr.mxu0 0.0
        %680 = vmatpush1.msra.mxu0 0.0
        %681 = vmatprep.mubr.f32.mxu0 0.0
        %682 = vmatmul.mubr.f32.gmra.mrb[0].mxu0 %v615
        %v683 = vpop.f32.mrb[0].mxu0
        %v684 = vadd.f32 0.0, %v683
        %v685 = vpop.f32.mrb[0].mxu0
        %686 = vdwg.mxu0
        %v687 = vrcp.pop %v613
        %v688 = vmul.f32 %v684, %v687
        %v689 = vld [vmem:[%s3] sm:$0xff]
        %v691 = vsel %vm527, %v688, 0
        %693 = vmatprep.subr.mxu0 0.0
        %694 = vmatpush1.msra.mxu0 %v689
        %695 = vmatprep.subr.mxu0 0.0
        %696 = vmatpush1.msra.mxu0 0.0
        %697 = vmatprep.subr.mxu0 0.0
        %698 = vmatpush1.msra.mxu0 0.0
        %699 = vmatprep.subr.mxu0 0.0
        %700 = vmatpush1.msra.mxu0 0.0
        %701 = vmatprep.subr.mxu0 0.0
        %702 = vmatpush1.msra.mxu0 0.0
        %703 = vmatprep.subr.mxu0 0.0
        %704 = vmatpush1.msra.mxu0 0.0
        %705 = vmatprep.subr.mxu0 0.0
        %706 = vmatpush1.msra.mxu0 0.0
        %707 = vmatprep.subr.mxu0 0.0
        %708 = vmatpush1.msra.mxu0 0.0
        %709 = vmatprep.subr.mxu0 0.0
        %710 = vmatpush1.msra.mxu0 0.0
        %711 = vmatprep.subr.mxu0 0.0
        %712 = vmatpush1.msra.mxu0 0.0
        %713 = vmatprep.subr.mxu0 0.0
        %714 = vmatpush1.msra.mxu0 0.0
        %715 = vmatprep.subr.mxu0 0.0
        %716 = vmatpush1.msra.mxu0 0.0
        %717 = vmatprep.subr.mxu0 0.0
        %718 = vmatpush1.msra.mxu0 0.0
        %719 = vmatprep.subr.mxu0 0.0
        %720 = vmatpush1.msra.mxu0 0.0
        %721 = vmatprep.subr.mxu0 0.0
        %722 = vmatpush1.msra.mxu0 0.0
        %723 = vmatprep.subr.mxu0 0.0
        %724 = vmatpush1.msra.mxu0 0.0
        %725 = vmatprep.subr.mxu0 0.0
        %726 = vmatpush1.msra.mxu0 0.0
        %727 = vmatprep.subr.mxu0 0.0
        %728 = vmatpush1.msra.mxu0 0.0
        %729 = vmatprep.subr.mxu0 0.0
        %730 = vmatpush1.msra.mxu0 0.0
        %731 = vmatprep.subr.mxu0 0.0
        %732 = vmatpush1.msra.mxu0 0.0
        %733 = vmatprep.subr.mxu0 0.0
        %734 = vmatpush1.msra.mxu0 0.0
        %735 = vmatprep.subr.mxu0 0.0
        %736 = vmatpush1.msra.mxu0 0.0
        %737 = vmatprep.subr.mxu0 0.0
        %738 = vmatpush1.msra.mxu0 0.0
        %739 = vmatprep.subr.mxu0 0.0
        %740 = vmatpush1.msra.mxu0 0.0
        %741 = vmatprep.subr.mxu0 0.0
        %742 = vmatpush1.msra.mxu0 0.0
        %743 = vmatprep.subr.mxu0 0.0
        %744 = vmatpush1.msra.mxu0 0.0
        %745 = vmatprep.subr.mxu0 0.0
        %746 = vmatpush1.msra.mxu0 0.0
        %747 = vmatprep.subr.mxu0 0.0
        %748 = vmatpush1.msra.mxu0 0.0
        %749 = vmatprep.subr.mxu0 0.0
        %750 = vmatpush1.msra.mxu0 0.0
        %751 = vmatprep.subr.mxu0 0.0
        %752 = vmatpush1.msra.mxu0 0.0
        %753 = vmatprep.subr.mxu0 0.0
        %754 = vmatpush1.msra.mxu0 0.0
        %755 = vmatprep.subr.mxu0 0.0
        %756 = vmatpush1.msra.mxu0 0.0
        %757 = vmatprep.mubr.f32.mxu0 0.0
        %758 = vmatmul.mubr.f32.gmra.mrb[0].mxu0 %v691
        %v759 = vpop.f32.mrb[0].mxu0
        %v760 = vadd.f32 0.0, %v759
        %v761 = vpop.f32.mrb[0].mxu0
        %762 = vdwg.mxu0
        %v764 = vlaneseq
        %v765 = vshrl.u32 %v764, 7
        %v766 = vsub.s32 0, %v765
        %v767 = vrot.slane %v275, %v766
        %v769 = vadd.f32 %v767, %v760
        %s770 = scalar_lea.vmem %s1, 32
        %v771 = vld [vmem:[%s770] sm:$0xff]
        %v772 = vld [vmem:[%s770 + $0x8] sm:$0xff]
        %v773 = vld [vmem:[%s770 + $0x10] sm:$0xff]
        %v774 = vld [vmem:[%s770 + $0x18] sm:$0xff]
        %s775 = scalar_lea.vmem %s2, 1
        %v776 = vld [vmem:[%s775] sm:$0x1]
        %v778 = vlaneseq
        %v779 = vshrl.u32 %v778, 7
        %v780 = vsub.s32 0, %v779
        %v781 = vrot.slane %v776, %v780
        %783 = vmatprep.subr.mxu0 0.0
        %784 = vmatpush1.msra.mxu0 %v771
        %785 = vmatprep.subr.mxu0 0.0
        %786 = vmatpush1.msra.mxu0 %v772
        %787 = vmatprep.subr.mxu0 0.0
        %788 = vmatpush1.msra.mxu0 %v773
        %789 = vmatprep.subr.mxu0 0.0
        %790 = vmatpush1.msra.mxu0 %v774
        %791 = vmatprep.subr.mxu0 0.0
        %792 = vmatpush1.msra.mxu0 0.0
        %793 = vmatprep.subr.mxu0 0.0
        %794 = vmatpush1.msra.mxu0 0.0
        %795 = vmatprep.subr.mxu0 0.0
        %796 = vmatpush1.msra.mxu0 0.0
        %797 = vmatprep.subr.mxu0 0.0
        %798 = vmatpush1.msra.mxu0 0.0
        %799 = vmatprep.subr.mxu0 0.0
        %800 = vmatpush1.msra.mxu0 0.0
        %801 = vmatprep.subr.mxu0 0.0
        %802 = vmatpush1.msra.mxu0 0.0
        %803 = vmatprep.subr.mxu0 0.0
        %804 = vmatpush1.msra.mxu0 0.0
        %805 = vmatprep.subr.mxu0 0.0
        %806 = vmatpush1.msra.mxu0 0.0
        %807 = vmatprep.subr.mxu0 0.0
        %808 = vmatpush1.msra.mxu0 0.0
        %809 = vmatprep.subr.mxu0 0.0
        %810 = vmatpush1.msra.mxu0 0.0
        %811 = vmatprep.subr.mxu0 0.0
        %812 = vmatpush1.msra.mxu0 0.0
        %813 = vmatprep.subr.mxu0 0.0
        %814 = vmatpush1.msra.mxu0 0.0
        %815 = vmatprep.subr.mxu0 0.0
        %816 = vmatpush1.msra.mxu0 0.0
        %817 = vmatprep.subr.mxu0 0.0
        %818 = vmatpush1.msra.mxu0 0.0
        %819 = vmatprep.subr.mxu0 0.0
        %820 = vmatpush1.msra.mxu0 0.0
        %821 = vmatprep.subr.mxu0 0.0
        %822 = vmatpush1.msra.mxu0 0.0
        %823 = vmatprep.subr.mxu0 0.0
        %824 = vmatpush1.msra.mxu0 0.0
        %825 = vmatprep.subr.mxu0 0.0
        %826 = vmatpush1.msra.mxu0 0.0
        %827 = vmatprep.subr.mxu0 0.0
        %828 = vmatpush1.msra.mxu0 0.0
        %829 = vmatprep.subr.mxu0 0.0
        %830 = vmatpush1.msra.mxu0 0.0
        %831 = vmatprep.subr.mxu0 0.0
        %832 = vmatpush1.msra.mxu0 0.0
        %833 = vmatprep.subr.mxu0 0.0
        %834 = vmatpush1.msra.mxu0 0.0
        %835 = vmatprep.subr.mxu0 0.0
        %836 = vmatpush1.msra.mxu0 0.0
        %837 = vmatprep.subr.mxu0 0.0
        %838 = vmatpush1.msra.mxu0 0.0
        %839 = vmatprep.subr.mxu0 0.0
        %840 = vmatpush1.msra.mxu0 0.0
        %841 = vmatprep.subr.mxu0 0.0
        %842 = vmatpush1.msra.mxu0 0.0
        %843 = vmatprep.subr.mxu0 0.0
        %844 = vmatpush1.msra.mxu0 0.0
        %845 = vmatprep.subr.mxu0 0.0
        %846 = vmatpush1.msra.mxu0 0.0
        %847 = vmatprep.mubr.f32.mxu0 0.0
        %848 = vmatmul.mubr.f32.gmra.mrb[0].mxu0 %v289
        %v849 = vpop.f32.mrb[0].mxu0
        %v850 = vadd.f32 %v781, %v849
        %v851 = vpop.f32.mrb[0].mxu0
        %852 = vdwg.mxu0
        %s853 = scalar_lea.vmem %s1, 160
        %v854 = vld [vmem:[%s853] sm:$0xff]
        %v855 = vld [vmem:[%s853 + $0x8] sm:$0xff]
        %v856 = vld [vmem:[%s853 + $0x10] sm:$0xff]
        %v857 = vld [vmem:[%s853 + $0x18] sm:$0xff]
        %s858 = scalar_lea.vmem %s2, 5
        %v859 = vld [vmem:[%s858] sm:$0x1]
        %v861 = vlaneseq
        %v862 = vshrl.u32 %v861, 7
        %v863 = vsub.s32 0, %v862
        %v864 = vrot.slane %v859, %v863
        %866 = vmatprep.subr.mxu0 0.0
        %867 = vmatpush1.msra.mxu0 %v854
        %868 = vmatprep.subr.mxu0 0.0
        %869 = vmatpush1.msra.mxu0 %v855
        %870 = vmatprep.subr.mxu0 0.0
        %871 = vmatpush1.msra.mxu0 %v856
        %872 = vmatprep.subr.mxu0 0.0
        %873 = vmatpush1.msra.mxu0 %v857
        %874 = vmatprep.subr.mxu0 0.0
        %875 = vmatpush1.msra.mxu0 0.0
        %876 = vmatprep.subr.mxu0 0.0
        %877 = vmatpush1.msra.mxu0 0.0
        %878 = vmatprep.subr.mxu0 0.0
        %879 = vmatpush1.msra.mxu0 0.0
        %880 = vmatprep.subr.mxu0 0.0
        %881 = vmatpush1.msra.mxu0 0.0
        %882 = vmatprep.subr.mxu0 0.0
        %883 = vmatpush1.msra.mxu0 0.0
        %884 = vmatprep.subr.mxu0 0.0
        %885 = vmatpush1.msra.mxu0 0.0
        %886 = vmatprep.subr.mxu0 0.0
        %887 = vmatpush1.msra.mxu0 0.0
        %888 = vmatprep.subr.mxu0 0.0
        %889 = vmatpush1.msra.mxu0 0.0
        %890 = vmatprep.subr.mxu0 0.0
        %891 = vmatpush1.msra.mxu0 0.0
        %892 = vmatprep.subr.mxu0 0.0
        %893 = vmatpush1.msra.mxu0 0.0
        %894 = vmatprep.subr.mxu0 0.0
        %895 = vmatpush1.msra.mxu0 0.0
        %896 = vmatprep.subr.mxu0 0.0
        %897 = vmatpush1.msra.mxu0 0.0
        %898 = vmatprep.subr.mxu0 0.0
        %899 = vmatpush1.msra.mxu0 0.0
        %900 = vmatprep.subr.mxu0 0.0
        %901 = vmatpush1.msra.mxu0 0.0
        %902 = vmatprep.subr.mxu0 0.0
        %903 = vmatpush1.msra.mxu0 0.0
        %904 = vmatprep.subr.mxu0 0.0
        %905 = vmatpush1.msra.mxu0 0.0
        %906 = vmatprep.subr.mxu0 0.0
        %907 = vmatpush1.msra.mxu0 0.0
        %908 = vmatprep.subr.mxu0 0.0
        %909 = vmatpush1.msra.mxu0 0.0
        %910 = vmatprep.subr.mxu0 0.0
        %911 = vmatpush1.msra.mxu0 0.0
        %912 = vmatprep.subr.mxu0 0.0
        %913 = vmatpush1.msra.mxu0 0.0
        %914 = vmatprep.subr.mxu0 0.0
        %915 = vmatpush1.msra.mxu0 0.0
        %916 = vmatprep.subr.mxu0 0.0
        %917 = vmatpush1.msra.mxu0 0.0
        %918 = vmatprep.subr.mxu0 0.0
        %919 = vmatpush1.msra.mxu0 0.0
        %920 = vmatprep.subr.mxu0 0.0
        %921 = vmatpush1.msra.mxu0 0.0
        %922 = vmatprep.subr.mxu0 0.0
        %923 = vmatpush1.msra.mxu0 0.0
        %924 = vmatprep.subr.mxu0 0.0
        %925 = vmatpush1.msra.mxu0 0.0
        %926 = vmatprep.subr.mxu0 0.0
        %927 = vmatpush1.msra.mxu0 0.0
        %928 = vmatprep.subr.mxu0 0.0
        %929 = vmatpush1.msra.mxu0 0.0
        %930 = vmatprep.mubr.f32.mxu0 0.0
        %931 = vmatmul.mubr.f32.gmra.mrb[0].mxu0 %v289
        %v932 = vpop.f32.mrb[0].mxu0
        %v933 = vadd.f32 %v864, %v932
        %v934 = vpop.f32.mrb[0].mxu0
        %935 = vdwg.mxu0
        %s936 = scalar_lea.vmem %s1, 288
        %v937 = vld [vmem:[%s936] sm:$0xff]
        %v938 = vld [vmem:[%s936 + $0x8] sm:$0xff]
        %v939 = vld [vmem:[%s936 + $0x10] sm:$0xff]
        %v940 = vld [vmem:[%s936 + $0x18] sm:$0xff]
        %s941 = scalar_lea.vmem %s2, 9
        %v942 = vld [vmem:[%s941] sm:$0x1]
        %v944 = vlaneseq
        %v945 = vshrl.u32 %v944, 7
        %v946 = vsub.s32 0, %v945
        %v947 = vrot.slane %v942, %v946
        %949 = vmatprep.subr.mxu0 0.0
        %950 = vmatpush1.msra.mxu0 %v937
        %951 = vmatprep.subr.mxu0 0.0
        %952 = vmatpush1.msra.mxu0 %v938
        %953 = vmatprep.subr.mxu0 0.0
        %954 = vmatpush1.msra.mxu0 %v939
        %955 = vmatprep.subr.mxu0 0.0
        %956 = vmatpush1.msra.mxu0 %v940
        %957 = vmatprep.subr.mxu0 0.0
        %958 = vmatpush1.msra.mxu0 0.0
        %959 = vmatprep.subr.mxu0 0.0
        %960 = vmatpush1.msra.mxu0 0.0
        %961 = vmatprep.subr.mxu0 0.0
        %962 = vmatpush1.msra.mxu0 0.0
        %963 = vmatprep.subr.mxu0 0.0
        %964 = vmatpush1.msra.mxu0 0.0
        %965 = vmatprep.subr.mxu0 0.0
        %966 = vmatpush1.msra.mxu0 0.0
        %967 = vmatprep.subr.mxu0 0.0
        %968 = vmatpush1.msra.mxu0 0.0
        %969 = vmatprep.subr.mxu0 0.0
        %970 = vmatpush1.msra.mxu0 0.0
        %971 = vmatprep.subr.mxu0 0.0
        %972 = vmatpush1.msra.mxu0 0.0
        %973 = vmatprep.subr.mxu0 0.0
        %974 = vmatpush1.msra.mxu0 0.0
        %975 = vmatprep.subr.mxu0 0.0
        %976 = vmatpush1.msra.mxu0 0.0
        %977 = vmatprep.subr.mxu0 0.0
        %978 = vmatpush1.msra.mxu0 0.0
        %979 = vmatprep.subr.mxu0 0.0
        %980 = vmatpush1.msra.mxu0 0.0
        %981 = vmatprep.subr.mxu0 0.0
        %982 = vmatpush1.msra.mxu0 0.0
        %983 = vmatprep.subr.mxu0 0.0
        %984 = vmatpush1.msra.mxu0 0.0
        %985 = vmatprep.subr.mxu0 0.0
        %986 = vmatpush1.msra.mxu0 0.0
        %987 = vmatprep.subr.mxu0 0.0
        %988 = vmatpush1.msra.mxu0 0.0
        %989 = vmatprep.subr.mxu0 0.0
        %990 = vmatpush1.msra.mxu0 0.0
        %991 = vmatprep.subr.mxu0 0.0
        %992 = vmatpush1.msra.mxu0 0.0
        %993 = vmatprep.subr.mxu0 0.0
        %994 = vmatpush1.msra.mxu0 0.0
        %995 = vmatprep.subr.mxu0 0.0
        %996 = vmatpush1.msra.mxu0 0.0
        %997 = vmatprep.subr.mxu0 0.0
        %998 = vmatpush1.msra.mxu0 0.0
        %999 = vmatprep.subr.mxu0 0.0
        %1000 = vmatpush1.msra.mxu0 0.0
        %1001 = vmatprep.subr.mxu0 0.0
        %1002 = vmatpush1.msra.mxu0 0.0
        %1003 = vmatprep.subr.mxu0 0.0
        %1004 = vmatpush1.msra.mxu0 0.0
        %1005 = vmatprep.subr.mxu0 0.0
        %1006 = vmatpush1.msra.mxu0 0.0
        %1007 = vmatprep.subr.mxu0 0.0
        %1008 = vmatpush1.msra.mxu0 0.0
        %1009 = vmatprep.subr.mxu0 0.0
        %1010 = vmatpush1.msra.mxu0 0.0
        %1011 = vmatprep.subr.mxu0 0.0
        %1012 = vmatpush1.msra.mxu0 0.0
        %1013 = vmatprep.mubr.f32.mxu0 0.0
        %1014 = vmatmul.mubr.f32.gmra.mrb[0].mxu0 %v289
        %v1015 = vpop.f32.mrb[0].mxu0
        %v1016 = vadd.f32 %v947, %v1015
        %v1017 = vpop.f32.mrb[0].mxu0
        %1018 = vdwg.mxu0
        %v1020 = vsel %vm527, %v850, 0
        %v1023 = vsel %vm527, %v933, 0
        %1025 = vmatprep.subr.mxu0 0.0
        %1026 = vmatpush1.xpose.msra.mxu0 %v1023
        %1027 = vmatprep.subr.mxu0 0.0
        %1028 = vmatpush1.xpose.msra.mxu0 0.0
        %1029 = vmatprep.subr.mxu0 0.0
        %1030 = vmatpush1.xpose.msra.mxu0 0.0
        %1031 = vmatprep.subr.mxu0 0.0
        %1032 = vmatpush1.xpose.msra.mxu0 0.0
        %1033 = vmatprep.subr.mxu0 0.0
        %1034 = vmatpush1.xpose.msra.mxu0 0.0
        %1035 = vmatprep.subr.mxu0 0.0
        %1036 = vmatpush1.xpose.msra.mxu0 0.0
        %1037 = vmatprep.subr.mxu0 0.0
        %1038 = vmatpush1.xpose.msra.mxu0 0.0
        %1039 = vmatprep.subr.mxu0 0.0
        %1040 = vmatpush1.xpose.msra.mxu0 0.0
        %1041 = vmatprep.subr.mxu0 0.0
        %1042 = vmatpush1.xpose.msra.mxu0 0.0
        %1043 = vmatprep.subr.mxu0 0.0
        %1044 = vmatpush1.xpose.msra.mxu0 0.0
        %1045 = vmatprep.subr.mxu0 0.0
        %1046 = vmatpush1.xpose.msra.mxu0 0.0
        %1047 = vmatprep.subr.mxu0 0.0
        %1048 = vmatpush1.xpose.msra.mxu0 0.0
        %1049 = vmatprep.subr.mxu0 0.0
        %1050 = vmatpush1.xpose.msra.mxu0 0.0
        %1051 = vmatprep.subr.mxu0 0.0
        %1052 = vmatpush1.xpose.msra.mxu0 0.0
        %1053 = vmatprep.subr.mxu0 0.0
        %1054 = vmatpush1.xpose.msra.mxu0 0.0
        %1055 = vmatprep.subr.mxu0 0.0
        %1056 = vmatpush1.xpose.msra.mxu0 0.0
        %1057 = vmatprep.subr.mxu0 0.0
        %1058 = vmatpush1.xpose.msra.mxu0 0.0
        %1059 = vmatprep.subr.mxu0 0.0
        %1060 = vmatpush1.xpose.msra.mxu0 0.0
        %1061 = vmatprep.subr.mxu0 0.0
        %1062 = vmatpush1.xpose.msra.mxu0 0.0
        %1063 = vmatprep.subr.mxu0 0.0
        %1064 = vmatpush1.xpose.msra.mxu0 0.0
        %1065 = vmatprep.subr.mxu0 0.0
        %1066 = vmatpush1.xpose.msra.mxu0 0.0
        %1067 = vmatprep.subr.mxu0 0.0
        %1068 = vmatpush1.xpose.msra.mxu0 0.0
        %1069 = vmatprep.subr.mxu0 0.0
        %1070 = vmatpush1.xpose.msra.mxu0 0.0
        %1071 = vmatprep.subr.mxu0 0.0
        %1072 = vmatpush1.xpose.msra.mxu0 0.0
        %1073 = vmatprep.subr.mxu0 0.0
        %1074 = vmatpush1.xpose.msra.mxu0 0.0
        %1075 = vmatprep.subr.mxu0 0.0
        %1076 = vmatpush1.xpose.msra.mxu0 0.0
        %1077 = vmatprep.subr.mxu0 0.0
        %1078 = vmatpush1.xpose.msra.mxu0 0.0
        %1079 = vmatprep.subr.mxu0 0.0
        %1080 = vmatpush1.xpose.msra.mxu0 0.0
        %1081 = vmatprep.subr.mxu0 0.0
        %1082 = vmatpush1.xpose.msra.mxu0 0.0
        %1083 = vmatprep.subr.mxu0 0.0
        %1084 = vmatpush1.xpose.msra.mxu0 0.0
        %1085 = vmatprep.subr.mxu0 0.0
        %1086 = vmatpush1.xpose.msra.mxu0 0.0
        %1087 = vmatprep.subr.mxu0 0.0
        %1088 = vmatpush1.xpose.msra.mxu0 0.0
        %1089 = vmatprep.mubr.f32.mxu0 0.0
        %1090 = vmatmul.mubr.f32.gmra.mrb[0].mxu0 %v1020
        %v1091 = vpop.f32.mrb[0].mxu0
        %v1092 = vadd.f32 0.0, %v1091
        %v1093 = vpop.f32.mrb[0].mxu0
        %1094 = vdwg.mxu0
        %v1095 = vmul.f32 %v1092, 0.35355338
        %v1096 = vsel %vm527, %v1095, -inf
        %1097 = vmax.xlane.f32.xlu0 %v1096
        %v1098 = vpop.xlane.xlu0 %1097
        %v1099 = vsub.f32 %v1095, %v1098
        %v1100 = vmul.f32 %v1099, 1.442695
        %v1101 = vpow.pop %v1100
        %v1102 = vsel %vm527, %v1101, 0.0
        %1103 = vadd.xlane.f32.xlu0 %v1102
        %v1104 = vpop.xlane.xlu0 %1103
        %v1106 = vsel %vm527, %v1101, 0
        %1108 = vmatprep.subr.mxu0 0.0
        %1109 = vmatpush1.msra.mxu0 %v1016
        %1110 = vmatprep.subr.mxu0 0.0
        %1111 = vmatpush1.msra.mxu0 0.0
        %1112 = vmatprep.subr.mxu0 0.0
        %1113 = vmatpush1.msra.mxu0 0.0
        %1114 = vmatprep.subr.mxu0 0.0
        %1115 = vmatpush1.msra.mxu0 0.0
        %1116 = vmatprep.subr.mxu0 0.0
        %1117 = vmatpush1.msra.mxu0 0.0
        %1118 = vmatprep.subr.mxu0 0.0
        %1119 = vmatpush1.msra.mxu0 0.0
        %1120 = vmatprep.subr.mxu0 0.0
        %1121 = vmatpush1.msra.mxu0 0.0
        %1122 = vmatprep.subr.mxu0 0.0
        %1123 = vmatpush1.msra.mxu0 0.0
        %1124 = vmatprep.subr.mxu0 0.0
        %1125 = vmatpush1.msra.mxu0 0.0
        %1126 = vmatprep.subr.mxu0 0.0
        %1127 = vmatpush1.msra.mxu0 0.0
        %1128 = vmatprep.subr.mxu0 0.0
        %1129 = vmatpush1.msra.mxu0 0.0
        %1130 = vmatprep.subr.mxu0 0.0
        %1131 = vmatpush1.msra.mxu0 0.0
        %1132 = vmatprep.subr.mxu0 0.0
        %1133 = vmatpush1.msra.mxu0 0.0
        %1134 = vmatprep.subr.mxu0 0.0
        %1135 = vmatpush1.msra.mxu0 0.0
        %1136 = vmatprep.subr.mxu0 0.0
        %1137 = vmatpush1.msra.mxu0 0.0
        %1138 = vmatprep.subr.mxu0 0.0
        %1139 = vmatpush1.msra.mxu0 0.0
        %1140 = vmatprep.subr.mxu0 0.0
        %1141 = vmatpush1.msra.mxu0 0.0
        %1142 = vmatprep.subr.mxu0 0.0
        %1143 = vmatpush1.msra.mxu0 0.0
        %1144 = vmatprep.subr.mxu0 0.0
        %1145 = vmatpush1.msra.mxu0 0.0
        %1146 = vmatprep.subr.mxu0 0.0
        %1147 = vmatpush1.msra.mxu0 0.0
        %1148 = vmatprep.subr.mxu0 0.0
        %1149 = vmatpush1.msra.mxu0 0.0
        %1150 = vmatprep.subr.mxu0 0.0
        %1151 = vmatpush1.msra.mxu0 0.0
        %1152 = vmatprep.subr.mxu0 0.0
        %1153 = vmatpush1.msra.mxu0 0.0
        %1154 = vmatprep.subr.mxu0 0.0
        %1155 = vmatpush1.msra.mxu0 0.0
        %1156 = vmatprep.subr.mxu0 0.0
        %1157 = vmatpush1.msra.mxu0 0.0
        %1158 = vmatprep.subr.mxu0 0.0
        %1159 = vmatpush1.msra.mxu0 0.0
        %1160 = vmatprep.subr.mxu0 0.0
        %1161 = vmatpush1.msra.mxu0 0.0
        %1162 = vmatprep.subr.mxu0 0.0
        %1163 = vmatpush1.msra.mxu0 0.0
        %1164 = vmatprep.subr.mxu0 0.0
        %1165 = vmatpush1.msra.mxu0 0.0
        %1166 = vmatprep.subr.mxu0 0.0
        %1167 = vmatpush1.msra.mxu0 0.0
        %1168 = vmatprep.subr.mxu0 0.0
        %1169 = vmatpush1.msra.mxu0 0.0
        %1170 = vmatprep.subr.mxu0 0.0
        %1171 = vmatpush1.msra.mxu0 0.0
        %1172 = vmatprep.mubr.f32.mxu0 0.0
        %1173 = vmatmul.mubr.f32.gmra.mrb[0].mxu0 %v1106
        %v1174 = vpop.f32.mrb[0].mxu0
        %v1175 = vadd.f32 0.0, %v1174
        %v1176 = vpop.f32.mrb[0].mxu0
        %1177 = vdwg.mxu0
        %v1178 = vrcp.pop %v1104
        %v1179 = vmul.f32 %v1175, %v1178
        %s1180 = scalar_lea.vmem %s3, 8
        %v1181 = vld [vmem:[%s1180] sm:$0xff]
        %v1183 = vsel %vm527, %v1179, 0
        %1185 = vmatprep.subr.mxu0 0.0
        %1186 = vmatpush1.msra.mxu0 %v1181
        %1187 = vmatprep.subr.mxu0 0.0
        %1188 = vmatpush1.msra.mxu0 0.0
        %1189 = vmatprep.subr.mxu0 0.0
        %1190 = vmatpush1.msra.mxu0 0.0
        %1191 = vmatprep.subr.mxu0 0.0
        %1192 = vmatpush1.msra.mxu0 0.0
        %1193 = vmatprep.subr.mxu0 0.0
        %1194 = vmatpush1.msra.mxu0 0.0
        %1195 = vmatprep.subr.mxu0 0.0
        %1196 = vmatpush1.msra.mxu0 0.0
        %1197 = vmatprep.subr.mxu0 0.0
        %1198 = vmatpush1.msra.mxu0 0.0
        %1199 = vmatprep.subr.mxu0 0.0
        %1200 = vmatpush1.msra.mxu0 0.0
        %1201 = vmatprep.subr.mxu0 0.0
        %1202 = vmatpush1.msra.mxu0 0.0
        %1203 = vmatprep.subr.mxu0 0.0
        %1204 = vmatpush1.msra.mxu0 0.0
        %1205 = vmatprep.subr.mxu0 0.0
        %1206 = vmatpush1.msra.mxu0 0.0
        %1207 = vmatprep.subr.mxu0 0.0
        %1208 = vmatpush1.msra.mxu0 0.0
        %1209 = vmatprep.subr.mxu0 0.0
        %1210 = vmatpush1.msra.mxu0 0.0
        %1211 = vmatprep.subr.mxu0 0.0
        %1212 = vmatpush1.msra.mxu0 0.0
        %1213 = vmatprep.subr.mxu0 0.0
        %1214 = vmatpush1.msra.mxu0 0.0
        %1215 = vmatprep.subr.mxu0 0.0
        %1216 = vmatpush1.msra.mxu0 0.0
        %1217 = vmatprep.subr.mxu0 0.0
        %1218 = vmatpush1.msra.mxu0 0.0
        %1219 = vmatprep.subr.mxu0 0.0
        %1220 = vmatpush1.msra.mxu0 0.0
        %1221 = vmatprep.subr.mxu0 0.0
        %1222 = vmatpush1.msra.mxu0 0.0
        %1223 = vmatprep.subr.mxu0 0.0
        %1224 = vmatpush1.msra.mxu0 0.0
        %1225 = vmatprep.subr.mxu0 0.0
        %1226 = vmatpush1.msra.mxu0 0.0
        %1227 = vmatprep.subr.mxu0 0.0
        %1228 = vmatpush1.msra.mxu0 0.0
        %1229 = vmatprep.subr.mxu0 0.0
        %1230 = vmatpush1.msra.mxu0 0.0
        %1231 = vmatprep.subr.mxu0 0.0
        %1232 = vmatpush1.msra.mxu0 0.0
        %1233 = vmatprep.subr.mxu0 0.0
        %1234 = vmatpush1.msra.mxu0 0.0
        %1235 = vmatprep.subr.mxu0 0.0
        %1236 = vmatpush1.msra.mxu0 0.0
        %1237 = vmatprep.subr.mxu0 0.0
        %1238 = vmatpush1.msra.mxu0 0.0
        %1239 = vmatprep.subr.mxu0 0.0
        %1240 = vmatpush1.msra.mxu0 0.0
        %1241 = vmatprep.subr.mxu0 0.0
        %1242 = vmatpush1.msra.mxu0 0.0
        %1243 = vmatprep.subr.mxu0 0.0
        %1244 = vmatpush1.msra.mxu0 0.0
        %1245 = vmatprep.subr.mxu0 0.0
        %1246 = vmatpush1.msra.mxu0 0.0
        %1247 = vmatprep.subr.mxu0 0.0
        %1248 = vmatpush1.msra.mxu0 0.0
        %1249 = vmatprep.mubr.f32.mxu0 0.0
        %1250 = vmatmul.mubr.f32.gmra.mrb[0].mxu0 %v1183
        %v1251 = vpop.f32.mrb[0].mxu0
        %v1252 = vadd.f32 0.0, %v1251
        %v1253 = vpop.f32.mrb[0].mxu0
        %1254 = vdwg.mxu0
        %v1255 = vadd.f32 %v769, %v1252
        %s1256 = scalar_lea.vmem %s1, 64
        %v1257 = vld [vmem:[%s1256] sm:$0xff]
        %v1258 = vld [vmem:[%s1256 + $0x8] sm:$0xff]
        %v1259 = vld [vmem:[%s1256 + $0x10] sm:$0xff]
        %v1260 = vld [vmem:[%s1256 + $0x18] sm:$0xff]
        %s1261 = scalar_lea.vmem %s2, 2
        %v1262 = vld [vmem:[%s1261] sm:$0x1]
        %v1264 = vlaneseq
        %v1265 = vshrl.u32 %v1264, 7
        %v1266 = vsub.s32 0, %v1265
        %v1267 = vrot.slane %v1262, %v1266
        %1269 = vmatprep.subr.mxu0 0.0
        %1270 = vmatpush1.msra.mxu0 %v1257
        %1271 = vmatprep.subr.mxu0 0.0
        %1272 = vmatpush1.msra.mxu0 %v1258
        %1273 = vmatprep.subr.mxu0 0.0
        %1274 = vmatpush1.msra.mxu0 %v1259
        %1275 = vmatprep.subr.mxu0 0.0
        %1276 = vmatpush1.msra.mxu0 %v1260
        %1277 = vmatprep.subr.mxu0 0.0
        %1278 = vmatpush1.msra.mxu0 0.0
        %1279 = vmatprep.subr.mxu0 0.0
        %1280 = vmatpush1.msra.mxu0 0.0
        %1281 = vmatprep.subr.mxu0 0.0
        %1282 = vmatpush1.msra.mxu0 0.0
        %1283 = vmatprep.subr.mxu0 0.0
        %1284 = vmatpush1.msra.mxu0 0.0
        %1285 = vmatprep.subr.mxu0 0.0
        %1286 = vmatpush1.msra.mxu0 0.0
        %1287 = vmatprep.subr.mxu0 0.0
        %1288 = vmatpush1.msra.mxu0 0.0
        %1289 = vmatprep.subr.mxu0 0.0
        %1290 = vmatpush1.msra.mxu0 0.0
        %1291 = vmatprep.subr.mxu0 0.0
        %1292 = vmatpush1.msra.mxu0 0.0
        %1293 = vmatprep.subr.mxu0 0.0
        %1294 = vmatpush1.msra.mxu0 0.0
        %1295 = vmatprep.subr.mxu0 0.0
        %1296 = vmatpush1.msra.mxu0 0.0
        %1297 = vmatprep.subr.mxu0 0.0
        %1298 = vmatpush1.msra.mxu0 0.0
        %1299 = vmatprep.subr.mxu0 0.0
        %1300 = vmatpush1.msra.mxu0 0.0
        %1301 = vmatprep.subr.mxu0 0.0
        %1302 = vmatpush1.msra.mxu0 0.0
        %1303 = vmatprep.subr.mxu0 0.0
        %1304 = vmatpush1.msra.mxu0 0.0
        %1305 = vmatprep.subr.mxu0 0.0
        %1306 = vmatpush1.msra.mxu0 0.0
        %1307 = vmatprep.subr.mxu0 0.0
        %1308 = vmatpush1.msra.mxu0 0.0
        %1309 = vmatprep.subr.mxu0 0.0
        %1310 = vmatpush1.msra.mxu0 0.0
        %1311 = vmatprep.subr.mxu0 0.0
        %1312 = vmatpush1.msra.mxu0 0.0
        %1313 = vmatprep.subr.mxu0 0.0
        %1314 = vmatpush1.msra.mxu0 0.0
        %1315 = vmatprep.subr.mxu0 0.0
        %1316 = vmatpush1.msra.mxu0 0.0
        %1317 = vmatprep.subr.mxu0 0.0
        %1318 = vmatpush1.msra.mxu0 0.0
        %1319 = vmatprep.subr.mxu0 0.0
        %1320 = vmatpush1.msra.mxu0 0.0
        %1321 = vmatprep.subr.mxu0 0.0
        %1322 = vmatpush1.msra.mxu0 0.0
        %1323 = vmatprep.subr.mxu0 0.0
        %1324 = vmatpush1.msra.mxu0 0.0
        %1325 = vmatprep.subr.mxu0 0.0
        %1326 = vmatpush1.msra.mxu0 0.0
        %1327 = vmatprep.subr.mxu0 0.0
        %1328 = vmatpush1.msra.mxu0 0.0
        %1329 = vmatprep.subr.mxu0 0.0
        %1330 = vmatpush1.msra.mxu0 0.0
        %1331 = vmatprep.subr.mxu0 0.0
        %1332 = vmatpush1.msra.mxu0 0.0
        %1333 = vmatprep.mubr.f32.mxu0 0.0
        %1334 = vmatmul.mubr.f32.gmra.mrb[0].mxu0 %v289
        %v1335 = vpop.f32.mrb[0].mxu0
        %v1336 = vadd.f32 %v1267, %v1335
        %v1337 = vpop.f32.mrb[0].mxu0
        %1338 = vdwg.mxu0
        %s1339 = scalar_lea.vmem %s1, 192
        %v1340 = vld [vmem:[%s1339] sm:$0xff]
        %v1341 = vld [vmem:[%s1339 + $0x8] sm:$0xff]
        %v1342 = vld [vmem:[%s1339 + $0x10] sm:$0xff]
        %v1343 = vld [vmem:[%s1339 + $0x18] sm:$0xff]
        %s1344 = scalar_lea.vmem %s2, 6
        %v1345 = vld [vmem:[%s1344] sm:$0x1]
        %v1347 = vlaneseq
        %v1348 = vshrl.u32 %v1347, 7
        %v1349 = vsub.s32 0, %v1348
        %v1350 = vrot.slane %v1345, %v1349
        %1352 = vmatprep.subr.mxu0 0.0
        %1353 = vmatpush1.msra.mxu0 %v1340
        %1354 = vmatprep.subr.mxu0 0.0
        %1355 = vmatpush1.msra.mxu0 %v1341
        %1356 = vmatprep.subr.mxu0 0.0
        %1357 = vmatpush1.msra.mxu0 %v1342
        %1358 = vmatprep.subr.mxu0 0.0
        %1359 = vmatpush1.msra.mxu0 %v1343
        %1360 = vmatprep.subr.mxu0 0.0
        %1361 = vmatpush1.msra.mxu0 0.0
        %1362 = vmatprep.subr.mxu0 0.0
        %1363 = vmatpush1.msra.mxu0 0.0
        %1364 = vmatprep.subr.mxu0 0.0
        %1365 = vmatpush1.msra.mxu0 0.0
        %1366 = vmatprep.subr.mxu0 0.0
        %1367 = vmatpush1.msra.mxu0 0.0
        %1368 = vmatprep.subr.mxu0 0.0
        %1369 = vmatpush1.msra.mxu0 0.0
        %1370 = vmatprep.subr.mxu0 0.0
        %1371 = vmatpush1.msra.mxu0 0.0
        %1372 = vmatprep.subr.mxu0 0.0
        %1373 = vmatpush1.msra.mxu0 0.0
        %1374 = vmatprep.subr.mxu0 0.0
        %1375 = vmatpush1.msra.mxu0 0.0
        %1376 = vmatprep.subr.mxu0 0.0
        %1377 = vmatpush1.msra.mxu0 0.0
        %1378 = vmatprep.subr.mxu0 0.0
        %1379 = vmatpush1.msra.mxu0 0.0
        %1380 = vmatprep.subr.mxu0 0.0
        %1381 = vmatpush1.msra.mxu0 0.0
        %1382 = vmatprep.subr.mxu0 0.0
        %1383 = vmatpush1.msra.mxu0 0.0
        %1384 = vmatprep.subr.mxu0 0.0
        %1385 = vmatpush1.msra.mxu0 0.0
        %1386 = vmatprep.subr.mxu0 0.0
        %1387 = vmatpush1.msra.mxu0 0.0
        %1388 = vmatprep.subr.mxu0 0.0
        %1389 = vmatpush1.msra.mxu0 0.0
        %1390 = vmatprep.subr.mxu0 0.0
        %1391 = vmatpush1.msra.mxu0 0.0
        %1392 = vmatprep.subr.mxu0 0.0
        %1393 = vmatpush1.msra.mxu0 0.0
        %1394 = vmatprep.subr.mxu0 0.0
        %1395 = vmatpush1.msra.mxu0 0.0
        %1396 = vmatprep.subr.mxu0 0.0
        %1397 = vmatpush1.msra.mxu0 0.0
        %1398 = vmatprep.subr.mxu0 0.0
        %1399 = vmatpush1.msra.mxu0 0.0
        %1400 = vmatprep.subr.mxu0 0.0
        %1401 = vmatpush1.msra.mxu0 0.0
        %1402 = vmatprep.subr.mxu0 0.0
        %1403 = vmatpush1.msra.mxu0 0.0
        %1404 = vmatprep.subr.mxu0 0.0
        %1405 = vmatpush1.msra.mxu0 0.0
        %1406 = vmatprep.subr.mxu0 0.0
        %1407 = vmatpush1.msra.mxu0 0.0
        %1408 = vmatprep.subr.mxu0 0.0
        %1409 = vmatpush1.msra.mxu0 0.0
        %1410 = vmatprep.subr.mxu0 0.0
        %1411 = vmatpush1.msra.mxu0 0.0
        %1412 = vmatprep.subr.mxu0 0.0
        %1413 = vmatpush1.msra.mxu0 0.0
        %1414 = vmatprep.subr.mxu0 0.0
        %1415 = vmatpush1.msra.mxu0 0.0
        %1416 = vmatprep.mubr.f32.mxu0 0.0
        %1417 = vmatmul.mubr.f32.gmra.mrb[0].mxu0 %v289
        %v1418 = vpop.f32.mrb[0].mxu0
        %v1419 = vadd.f32 %v1350, %v1418
        %v1420 = vpop.f32.mrb[0].mxu0
        %1421 = vdwg.mxu0
        %s1422 = scalar_lea.vmem %s1, 320
        %v1423 = vld [vmem:[%s1422] sm:$0xff]
        %v1424 = vld [vmem:[%s1422 + $0x8] sm:$0xff]
        %v1425 = vld [vmem:[%s1422 + $0x10] sm:$0xff]
        %v1426 = vld [vmem:[%s1422 + $0x18] sm:$0xff]
        %s1427 = scalar_lea.vmem %s2, 10
        %v1428 = vld [vmem:[%s1427] sm:$0x1]
        %v1430 = vlaneseq
        %v1431 = vshrl.u32 %v1430, 7
        %v1432 = vsub.s32 0, %v1431
        %v1433 = vrot.slane %v1428, %v1432
        %1435 = vmatprep.subr.mxu0 0.0
        %1436 = vmatpush1.msra.mxu0 %v1423
        %1437 = vmatprep.subr.mxu0 0.0
        %1438 = vmatpush1.msra.mxu0 %v1424
        %1439 = vmatprep.subr.mxu0 0.0
        %1440 = vmatpush1.msra.mxu0 %v1425
        %1441 = vmatprep.subr.mxu0 0.0
        %1442 = vmatpush1.msra.mxu0 %v1426
        %1443 = vmatprep.subr.mxu0 0.0
        %1444 = vmatpush1.msra.mxu0 0.0
        %1445 = vmatprep.subr.mxu0 0.0
        %1446 = vmatpush1.msra.mxu0 0.0
        %1447 = vmatprep.subr.mxu0 0.0
        %1448 = vmatpush1.msra.mxu0 0.0
        %1449 = vmatprep.subr.mxu0 0.0
        %1450 = vmatpush1.msra.mxu0 0.0
        %1451 = vmatprep.subr.mxu0 0.0
        %1452 = vmatpush1.msra.mxu0 0.0
        %1453 = vmatprep.subr.mxu0 0.0
        %1454 = vmatpush1.msra.mxu0 0.0
        %1455 = vmatprep.subr.mxu0 0.0
        %1456 = vmatpush1.msra.mxu0 0.0
        %1457 = vmatprep.subr.mxu0 0.0
        %1458 = vmatpush1.msra.mxu0 0.0
        %1459 = vmatprep.subr.mxu0 0.0
        %1460 = vmatpush1.msra.mxu0 0.0
        %1461 = vmatprep.subr.mxu0 0.0
        %1462 = vmatpush1.msra.mxu0 0.0
        %1463 = vmatprep.subr.mxu0 0.0
        %1464 = vmatpush1.msra.mxu0 0.0
        %1465 = vmatprep.subr.mxu0 0.0
        %1466 = vmatpush1.msra.mxu0 0.0
        %1467 = vmatprep.subr.mxu0 0.0
        %1468 = vmatpush1.msra.mxu0 0.0
        %1469 = vmatprep.subr.mxu0 0.0
        %1470 = vmatpush1.msra.mxu0 0.0
        %1471 = vmatprep.subr.mxu0 0.0
        %1472 = vmatpush1.msra.mxu0 0.0
        %1473 = vmatprep.subr.mxu0 0.0
        %1474 = vmatpush1.msra.mxu0 0.0
        %1475 = vmatprep.subr.mxu0 0.0
        %1476 = vmatpush1.msra.mxu0 0.0
        %1477 = vmatprep.subr.mxu0 0.0
        %1478 = vmatpush1.msra.mxu0 0.0
        %1479 = vmatprep.subr.mxu0 0.0
        %1480 = vmatpush1.msra.mxu0 0.0
        %1481 = vmatprep.subr.mxu0 0.0
        %1482 = vmatpush1.msra.mxu0 0.0
        %1483 = vmatprep.subr.mxu0 0.0
        %1484 = vmatpush1.msra.mxu0 0.0
        %1485 = vmatprep.subr.mxu0 0.0
        %1486 = vmatpush1.msra.mxu0 0.0
        %1487 = vmatprep.subr.mxu0 0.0
        %1488 = vmatpush1.msra.mxu0 0.0
        %1489 = vmatprep.subr.mxu0 0.0
        %1490 = vmatpush1.msra.mxu0 0.0
        %1491 = vmatprep.subr.mxu0 0.0
        %1492 = vmatpush1.msra.mxu0 0.0
        %1493 = vmatprep.subr.mxu0 0.0
        %1494 = vmatpush1.msra.mxu0 0.0
        %1495 = vmatprep.subr.mxu0 0.0
        %1496 = vmatpush1.msra.mxu0 0.0
        %1497 = vmatprep.subr.mxu0 0.0
        %1498 = vmatpush1.msra.mxu0 0.0
        %1499 = vmatprep.mubr.f32.mxu0 0.0
        %1500 = vmatmul.mubr.f32.gmra.mrb[0].mxu0 %v289
        %v1501 = vpop.f32.mrb[0].mxu0
        %v1502 = vadd.f32 %v1433, %v1501
        %v1503 = vpop.f32.mrb[0].mxu0
        %1504 = vdwg.mxu0
        %v1506 = vsel %vm527, %v1336, 0
        %v1509 = vsel %vm527, %v1419, 0
        %1511 = vmatprep.subr.mxu0 0.0
        %1512 = vmatpush1.xpose.msra.mxu0 %v1509
        %1513 = vmatprep.subr.mxu0 0.0
        %1514 = vmatpush1.xpose.msra.mxu0 0.0
        %1515 = vmatprep.subr.mxu0 0.0
        %1516 = vmatpush1.xpose.msra.mxu0 0.0
        %1517 = vmatprep.subr.mxu0 0.0
        %1518 = vmatpush1.xpose.msra.mxu0 0.0
        %1519 = vmatprep.subr.mxu0 0.0
        %1520 = vmatpush1.xpose.msra.mxu0 0.0
        %1521 = vmatprep.subr.mxu0 0.0
        %1522 = vmatpush1.xpose.msra.mxu0 0.0
        %1523 = vmatprep.subr.mxu0 0.0
        %1524 = vmatpush1.xpose.msra.mxu0 0.0
        %1525 = vmatprep.subr.mxu0 0.0
        %1526 = vmatpush1.xpose.msra.mxu0 0.0
        %1527 = vmatprep.subr.mxu0 0.0
        %1528 = vmatpush1.xpose.msra.mxu0 0.0
        %1529 = vmatprep.subr.mxu0 0.0
        %1530 = vmatpush1.xpose.msra.mxu0 0.0
        %1531 = vmatprep.subr.mxu0 0.0
        %1532 = vmatpush1.xpose.msra.mxu0 0.0
        %1533 = vmatprep.subr.mxu0 0.0
        %1534 = vmatpush1.xpose.msra.mxu0 0.0
        %1535 = vmatprep.subr.mxu0 0.0
        %1536 = vmatpush1.xpose.msra.mxu0 0.0
        %1537 = vmatprep.subr.mxu0 0.0
        %1538 = vmatpush1.xpose.msra.mxu0 0.0
        %1539 = vmatprep.subr.mxu0 0.0
        %1540 = vmatpush1.xpose.msra.mxu0 0.0
        %1541 = vmatprep.subr.mxu0 0.0
        %1542 = vmatpush1.xpose.msra.mxu0 0.0
        %1543 = vmatprep.subr.mxu0 0.0
        %1544 = vmatpush1.xpose.msra.mxu0 0.0
        %1545 = vmatprep.subr.mxu0 0.0
        %1546 = vmatpush1.xpose.msra.mxu0 0.0
        %1547 = vmatprep.subr.mxu0 0.0
        %1548 = vmatpush1.xpose.msra.mxu0 0.0
        %1549 = vmatprep.subr.mxu0 0.0
        %1550 = vmatpush1.xpose.msra.mxu0 0.0
        %1551 = vmatprep.subr.mxu0 0.0
        %1552 = vmatpush1.xpose.msra.mxu0 0.0
        %1553 = vmatprep.subr.mxu0 0.0
        %1554 = vmatpush1.xpose.msra.mxu0 0.0
        %1555 = vmatprep.subr.mxu0 0.0
        %1556 = vmatpush1.xpose.msra.mxu0 0.0
        %1557 = vmatprep.subr.mxu0 0.0
        %1558 = vmatpush1.xpose.msra.mxu0 0.0
        %1559 = vmatprep.subr.mxu0 0.0
        %1560 = vmatpush1.xpose.msra.mxu0 0.0
        %1561 = vmatprep.subr.mxu0 0.0
        %1562 = vmatpush1.xpose.msra.mxu0 0.0
        %1563 = vmatprep.subr.mxu0 0.0
        %1564 = vmatpush1.xpose.msra.mxu0 0.0
        %1565 = vmatprep.subr.mxu0 0.0
        %1566 = vmatpush1.xpose.msra.mxu0 0.0
        %1567 = vmatprep.subr.mxu0 0.0
        %1568 = vmatpush1.xpose.msra.mxu0 0.0
        %1569 = vmatprep.subr.mxu0 0.0
        %1570 = vmatpush1.xpose.msra.mxu0 0.0
        %1571 = vmatprep.subr.mxu0 0.0
        %1572 = vmatpush1.xpose.msra.mxu0 0.0
        %1573 = vmatprep.subr.mxu0 0.0
        %1574 = vmatpush1.xpose.msra.mxu0 0.0
        %1575 = vmatprep.mubr.f32.mxu0 0.0
        %1576 = vmatmul.mubr.f32.gmra.mrb[0].mxu0 %v1506
        %v1577 = vpop.f32.mrb[0].mxu0
        %v1578 = vadd.f32 0.0, %v1577
        %v1579 = vpop.f32.mrb[0].mxu0
        %1580 = vdwg.mxu0
        %v1581 = vmul.f32 %v1578, 0.35355338
        %v1582 = vsel %vm527, %v1581, -inf
        %1583 = vmax.xlane.f32.xlu0 %v1582
        %v1584 = vpop.xlane.xlu0 %1583
        %v1585 = vsub.f32 %v1581, %v1584
        %v1586 = vmul.f32 %v1585, 1.442695
        %v1587 = vpow.pop %v1586
        %v1588 = vsel %vm527, %v1587, 0.0
        %1589 = vadd.xlane.f32.xlu0 %v1588
        %v1590 = vpop.xlane.xlu0 %1589
        %v1592 = vsel %vm527, %v1587, 0
        %1594 = vmatprep.subr.mxu0 0.0
        %1595 = vmatpush1.msra.mxu0 %v1502
        %1596 = vmatprep.subr.mxu0 0.0
        %1597 = vmatpush1.msra.mxu0 0.0
        %1598 = vmatprep.subr.mxu0 0.0
        %1599 = vmatpush1.msra.mxu0 0.0
        %1600 = vmatprep.subr.mxu0 0.0
        %1601 = vmatpush1.msra.mxu0 0.0
        %1602 = vmatprep.subr.mxu0 0.0
        %1603 = vmatpush1.msra.mxu0 0.0
        %1604 = vmatprep.subr.mxu0 0.0
        %1605 = vmatpush1.msra.mxu0 0.0
        %1606 = vmatprep.subr.mxu0 0.0
        %1607 = vmatpush1.msra.mxu0 0.0
        %1608 = vmatprep.subr.mxu0 0.0
        %1609 = vmatpush1.msra.mxu0 0.0
        %1610 = vmatprep.subr.mxu0 0.0
        %1611 = vmatpush1.msra.mxu0 0.0
        %1612 = vmatprep.subr.mxu0 0.0
        %1613 = vmatpush1.msra.mxu0 0.0
        %1614 = vmatprep.subr.mxu0 0.0
        %1615 = vmatpush1.msra.mxu0 0.0
        %1616 = vmatprep.subr.mxu0 0.0
        %1617 = vmatpush1.msra.mxu0 0.0
        %1618 = vmatprep.subr.mxu0 0.0
        %1619 = vmatpush1.msra.mxu0 0.0
        %1620 = vmatprep.subr.mxu0 0.0
        %1621 = vmatpush1.msra.mxu0 0.0
        %1622 = vmatprep.subr.mxu0 0.0
        %1623 = vmatpush1.msra.mxu0 0.0
        %1624 = vmatprep.subr.mxu0 0.0
        %1625 = vmatpush1.msra.mxu0 0.0
        %1626 = vmatprep.subr.mxu0 0.0
        %1627 = vmatpush1.msra.mxu0 0.0
        %1628 = vmatprep.subr.mxu0 0.0
        %1629 = vmatpush1.msra.mxu0 0.0
        %1630 = vmatprep.subr.mxu0 0.0
        %1631 = vmatpush1.msra.mxu0 0.0
        %1632 = vmatprep.subr.mxu0 0.0
        %1633 = vmatpush1.msra.mxu0 0.0
        %1634 = vmatprep.subr.mxu0 0.0
        %1635 = vmatpush1.msra.mxu0 0.0
        %1636 = vmatprep.subr.mxu0 0.0
        %1637 = vmatpush1.msra.mxu0 0.0
        %1638 = vmatprep.subr.mxu0 0.0
        %1639 = vmatpush1.msra.mxu0 0.0
        %1640 = vmatprep.subr.mxu0 0.0
        %1641 = vmatpush1.msra.mxu0 0.0
        %1642 = vmatprep.subr.mxu0 0.0
        %1643 = vmatpush1.msra.mxu0 0.0
        %1644 = vmatprep.subr.mxu0 0.0
        %1645 = vmatpush1.msra.mxu0 0.0
        %1646 = vmatprep.subr.mxu0 0.0
        %1647 = vmatpush1.msra.mxu0 0.0
        %1648 = vmatprep.subr.mxu0 0.0
        %1649 = vmatpush1.msra.mxu0 0.0
        %1650 = vmatprep.subr.mxu0 0.0
        %1651 = vmatpush1.msra.mxu0 0.0
        %1652 = vmatprep.subr.mxu0 0.0
        %1653 = vmatpush1.msra.mxu0 0.0
        %1654 = vmatprep.subr.mxu0 0.0
        %1655 = vmatpush1.msra.mxu0 0.0
        %1656 = vmatprep.subr.mxu0 0.0
        %1657 = vmatpush1.msra.mxu0 0.0
        %1658 = vmatprep.mubr.f32.mxu0 0.0
        %1659 = vmatmul.mubr.f32.gmra.mrb[0].mxu0 %v1592
        %v1660 = vpop.f32.mrb[0].mxu0
        %v1661 = vadd.f32 0.0, %v1660
        %v1662 = vpop.f32.mrb[0].mxu0
        %1663 = vdwg.mxu0
        %v1664 = vrcp.pop %v1590
        %v1665 = vmul.f32 %v1661, %v1664
        %s1666 = scalar_lea.vmem %s3, 16
        %v1667 = vld [vmem:[%s1666] sm:$0xff]
        %v1669 = vsel %vm527, %v1665, 0
        %1671 = vmatprep.subr.mxu0 0.0
        %1672 = vmatpush1.msra.mxu0 %v1667
        %1673 = vmatprep.subr.mxu0 0.0
        %1674 = vmatpush1.msra.mxu0 0.0
        %1675 = vmatprep.subr.mxu0 0.0
        %1676 = vmatpush1.msra.mxu0 0.0
        %1677 = vmatprep.subr.mxu0 0.0
        %1678 = vmatpush1.msra.mxu0 0.0
        %1679 = vmatprep.subr.mxu0 0.0
        %1680 = vmatpush1.msra.mxu0 0.0
        %1681 = vmatprep.subr.mxu0 0.0
        %1682 = vmatpush1.msra.mxu0 0.0
        %1683 = vmatprep.subr.mxu0 0.0
        %1684 = vmatpush1.msra.mxu0 0.0
        %1685 = vmatprep.subr.mxu0 0.0
        %1686 = vmatpush1.msra.mxu0 0.0
        %1687 = vmatprep.subr.mxu0 0.0
        %1688 = vmatpush1.msra.mxu0 0.0
        %1689 = vmatprep.subr.mxu0 0.0
        %1690 = vmatpush1.msra.mxu0 0.0
        %1691 = vmatprep.subr.mxu0 0.0
        %1692 = vmatpush1.msra.mxu0 0.0
        %1693 = vmatprep.subr.mxu0 0.0
        %1694 = vmatpush1.msra.mxu0 0.0
        %1695 = vmatprep.subr.mxu0 0.0
        %1696 = vmatpush1.msra.mxu0 0.0
        %1697 = vmatprep.subr.mxu0 0.0
        %1698 = vmatpush1.msra.mxu0 0.0
        %1699 = vmatprep.subr.mxu0 0.0
        %1700 = vmatpush1.msra.mxu0 0.0
        %1701 = vmatprep.subr.mxu0 0.0
        %1702 = vmatpush1.msra.mxu0 0.0
        %1703 = vmatprep.subr.mxu0 0.0
        %1704 = vmatpush1.msra.mxu0 0.0
        %1705 = vmatprep.subr.mxu0 0.0
        %1706 = vmatpush1.msra.mxu0 0.0
        %1707 = vmatprep.subr.mxu0 0.0
        %1708 = vmatpush1.msra.mxu0 0.0
        %1709 = vmatprep.subr.mxu0 0.0
        %1710 = vmatpush1.msra.mxu0 0.0
        %1711 = vmatprep.subr.mxu0 0.0
        %1712 = vmatpush1.msra.mxu0 0.0
        %1713 = vmatprep.subr.mxu0 0.0
        %1714 = vmatpush1.msra.mxu0 0.0
        %1715 = vmatprep.subr.mxu0 0.0
        %1716 = vmatpush1.msra.mxu0 0.0
        %1717 = vmatprep.subr.mxu0 0.0
        %1718 = vmatpush1.msra.mxu0 0.0
        %1719 = vmatprep.subr.mxu0 0.0
        %1720 = vmatpush1.msra.mxu0 0.0
        %1721 = vmatprep.subr.mxu0 0.0
        %1722 = vmatpush1.msra.mxu0 0.0
        %1723 = vmatprep.subr.mxu0 0.0
        %1724 = vmatpush1.msra.mxu0 0.0
        %1725 = vmatprep.subr.mxu0 0.0
        %1726 = vmatpush1.msra.mxu0 0.0
        %1727 = vmatprep.subr.mxu0 0.0
        %1728 = vmatpush1.msra.mxu0 0.0
        %1729 = vmatprep.subr.mxu0 0.0
        %1730 = vmatpush1.msra.mxu0 0.0
        %1731 = vmatprep.subr.mxu0 0.0
        %1732 = vmatpush1.msra.mxu0 0.0
        %1733 = vmatprep.subr.mxu0 0.0
        %1734 = vmatpush1.msra.mxu0 0.0
        %1735 = vmatprep.mubr.f32.mxu0 0.0
        %1736 = vmatmul.mubr.f32.gmra.mrb[0].mxu0 %v1669
        %v1737 = vpop.f32.mrb[0].mxu0
        %v1738 = vadd.f32 0.0, %v1737
        %v1739 = vpop.f32.mrb[0].mxu0
        %1740 = vdwg.mxu0
        %v1741 = vadd.f32 %v1255, %v1738
        %s1742 = scalar_lea.vmem %s1, 96
        %v1743 = vld [vmem:[%s1742] sm:$0xff]
        %v1744 = vld [vmem:[%s1742 + $0x8] sm:$0xff]
        %v1745 = vld [vmem:[%s1742 + $0x10] sm:$0xff]
        %v1746 = vld [vmem:[%s1742 + $0x18] sm:$0xff]
        %s1747 = scalar_lea.vmem %s2, 3
        %v1748 = vld [vmem:[%s1747] sm:$0x1]
        %v1750 = vlaneseq
        %v1751 = vshrl.u32 %v1750, 7
        %v1752 = vsub.s32 0, %v1751
        %v1753 = vrot.slane %v1748, %v1752
        %1755 = vmatprep.subr.mxu0 0.0
        %1756 = vmatpush1.msra.mxu0 %v1743
        %1757 = vmatprep.subr.mxu0 0.0
        %1758 = vmatpush1.msra.mxu0 %v1744
        %1759 = vmatprep.subr.mxu0 0.0
        %1760 = vmatpush1.msra.mxu0 %v1745
        %1761 = vmatprep.subr.mxu0 0.0
        %1762 = vmatpush1.msra.mxu0 %v1746
        %1763 = vmatprep.subr.mxu0 0.0
        %1764 = vmatpush1.msra.mxu0 0.0
        %1765 = vmatprep.subr.mxu0 0.0
        %1766 = vmatpush1.msra.mxu0 0.0
        %1767 = vmatprep.subr.mxu0 0.0
        %1768 = vmatpush1.msra.mxu0 0.0
        %1769 = vmatprep.subr.mxu0 0.0
        %1770 = vmatpush1.msra.mxu0 0.0
        %1771 = vmatprep.subr.mxu0 0.0
        %1772 = vmatpush1.msra.mxu0 0.0
        %1773 = vmatprep.subr.mxu0 0.0
        %1774 = vmatpush1.msra.mxu0 0.0
        %1775 = vmatprep.subr.mxu0 0.0
        %1776 = vmatpush1.msra.mxu0 0.0
        %1777 = vmatprep.subr.mxu0 0.0
        %1778 = vmatpush1.msra.mxu0 0.0
        %1779 = vmatprep.subr.mxu0 0.0
        %1780 = vmatpush1.msra.mxu0 0.0
        %1781 = vmatprep.subr.mxu0 0.0
        %1782 = vmatpush1.msra.mxu0 0.0
        %1783 = vmatprep.subr.mxu0 0.0
        %1784 = vmatpush1.msra.mxu0 0.0
        %1785 = vmatprep.subr.mxu0 0.0
        %1786 = vmatpush1.msra.mxu0 0.0
        %1787 = vmatprep.subr.mxu0 0.0
        %1788 = vmatpush1.msra.mxu0 0.0
        %1789 = vmatprep.subr.mxu0 0.0
        %1790 = vmatpush1.msra.mxu0 0.0
        %1791 = vmatprep.subr.mxu0 0.0
        %1792 = vmatpush1.msra.mxu0 0.0
        %1793 = vmatprep.subr.mxu0 0.0
        %1794 = vmatpush1.msra.mxu0 0.0
        %1795 = vmatprep.subr.mxu0 0.0
        %1796 = vmatpush1.msra.mxu0 0.0
        %1797 = vmatprep.subr.mxu0 0.0
        %1798 = vmatpush1.msra.mxu0 0.0
        %1799 = vmatprep.subr.mxu0 0.0
        %1800 = vmatpush1.msra.mxu0 0.0
        %1801 = vmatprep.subr.mxu0 0.0
        %1802 = vmatpush1.msra.mxu0 0.0
        %1803 = vmatprep.subr.mxu0 0.0
        %1804 = vmatpush1.msra.mxu0 0.0
        %1805 = vmatprep.subr.mxu0 0.0
        %1806 = vmatpush1.msra.mxu0 0.0
        %1807 = vmatprep.subr.mxu0 0.0
        %1808 = vmatpush1.msra.mxu0 0.0
        %1809 = vmatprep.subr.mxu0 0.0
        %1810 = vmatpush1.msra.mxu0 0.0
        %1811 = vmatprep.subr.mxu0 0.0
        %1812 = vmatpush1.msra.mxu0 0.0
        %1813 = vmatprep.subr.mxu0 0.0
        %1814 = vmatpush1.msra.mxu0 0.0
        %1815 = vmatprep.subr.mxu0 0.0
        %1816 = vmatpush1.msra.mxu0 0.0
        %1817 = vmatprep.subr.mxu0 0.0
        %1818 = vmatpush1.msra.mxu0 0.0
        %1819 = vmatprep.mubr.f32.mxu0 0.0
        %1820 = vmatmul.mubr.f32.gmra.mrb[0].mxu0 %v289
        %v1821 = vpop.f32.mrb[0].mxu0
        %v1822 = vadd.f32 %v1753, %v1821
        %v1823 = vpop.f32.mrb[0].mxu0
        %1824 = vdwg.mxu0
        %s1825 = scalar_lea.vmem %s1, 224
        %v1826 = vld [vmem:[%s1825] sm:$0xff]
        %v1827 = vld [vmem:[%s1825 + $0x8] sm:$0xff]
        %v1828 = vld [vmem:[%s1825 + $0x10] sm:$0xff]
        %v1829 = vld [vmem:[%s1825 + $0x18] sm:$0xff]
        %s1830 = scalar_lea.vmem %s2, 7
        %v1831 = vld [vmem:[%s1830] sm:$0x1]
        %v1833 = vlaneseq
        %v1834 = vshrl.u32 %v1833, 7
        %v1835 = vsub.s32 0, %v1834
        %v1836 = vrot.slane %v1831, %v1835
        %1838 = vmatprep.subr.mxu0 0.0
        %1839 = vmatpush1.msra.mxu0 %v1826
        %1840 = vmatprep.subr.mxu0 0.0
        %1841 = vmatpush1.msra.mxu0 %v1827
        %1842 = vmatprep.subr.mxu0 0.0
        %1843 = vmatpush1.msra.mxu0 %v1828
        %1844 = vmatprep.subr.mxu0 0.0
        %1845 = vmatpush1.msra.mxu0 %v1829
        %1846 = vmatprep.subr.mxu0 0.0
        %1847 = vmatpush1.msra.mxu0 0.0
        %1848 = vmatprep.subr.mxu0 0.0
        %1849 = vmatpush1.msra.mxu0 0.0
        %1850 = vmatprep.subr.mxu0 0.0
        %1851 = vmatpush1.msra.mxu0 0.0
        %1852 = vmatprep.subr.mxu0 0.0
        %1853 = vmatpush1.msra.mxu0 0.0
        %1854 = vmatprep.subr.mxu0 0.0
        %1855 = vmatpush1.msra.mxu0 0.0
        %1856 = vmatprep.subr.mxu0 0.0
        %1857 = vmatpush1.msra.mxu0 0.0
        %1858 = vmatprep.subr.mxu0 0.0
        %1859 = vmatpush1.msra.mxu0 0.0
        %1860 = vmatprep.subr.mxu0 0.0
        %1861 = vmatpush1.msra.mxu0 0.0
        %1862 = vmatprep.subr.mxu0 0.0
        %1863 = vmatpush1.msra.mxu0 0.0
        %1864 = vmatprep.subr.mxu0 0.0
        %1865 = vmatpush1.msra.mxu0 0.0
        %1866 = vmatprep.subr.mxu0 0.0
        %1867 = vmatpush1.msra.mxu0 0.0
        %1868 = vmatprep.subr.mxu0 0.0
        %1869 = vmatpush1.msra.mxu0 0.0
        %1870 = vmatprep.subr.mxu0 0.0
        %1871 = vmatpush1.msra.mxu0 0.0
        %1872 = vmatprep.subr.mxu0 0.0
        %1873 = vmatpush1.msra.mxu0 0.0
        %1874 = vmatprep.subr.mxu0 0.0
        %1875 = vmatpush1.msra.mxu0 0.0
        %1876 = vmatprep.subr.mxu0 0.0
        %1877 = vmatpush1.msra.mxu0 0.0
        %1878 = vmatprep.subr.mxu0 0.0
        %1879 = vmatpush1.msra.mxu0 0.0
        %1880 = vmatprep.subr.mxu0 0.0
        %1881 = vmatpush1.msra.mxu0 0.0
        %1882 = vmatprep.subr.mxu0 0.0
        %1883 = vmatpush1.msra.mxu0 0.0
        %1884 = vmatprep.subr.mxu0 0.0
        %1885 = vmatpush1.msra.mxu0 0.0
        %1886 = vmatprep.subr.mxu0 0.0
        %1887 = vmatpush1.msra.mxu0 0.0
        %1888 = vmatprep.subr.mxu0 0.0
        %1889 = vmatpush1.msra.mxu0 0.0
        %1890 = vmatprep.subr.mxu0 0.0
        %1891 = vmatpush1.msra.mxu0 0.0
        %1892 = vmatprep.subr.mxu0 0.0
        %1893 = vmatpush1.msra.mxu0 0.0
        %1894 = vmatprep.subr.mxu0 0.0
        %1895 = vmatpush1.msra.mxu0 0.0
        %1896 = vmatprep.subr.mxu0 0.0
        %1897 = vmatpush1.msra.mxu0 0.0
        %1898 = vmatprep.subr.mxu0 0.0
        %1899 = vmatpush1.msra.mxu0 0.0
        %1900 = vmatprep.subr.mxu0 0.0
        %1901 = vmatpush1.msra.mxu0 0.0
        %1902 = vmatprep.mubr.f32.mxu0 0.0
        %1903 = vmatmul.mubr.f32.gmra.mrb[0].mxu0 %v289
        %v1904 = vpop.f32.mrb[0].mxu0
        %v1905 = vadd.f32 %v1836, %v1904
        %v1906 = vpop.f32.mrb[0].mxu0
        %1907 = vdwg.mxu0
        %s1908 = scalar_lea.vmem %s1, 352
        %v1909 = vld [vmem:[%s1908] sm:$0xff]
        %v1910 = vld [vmem:[%s1908 + $0x8] sm:$0xff]
        %v1911 = vld [vmem:[%s1908 + $0x10] sm:$0xff]
        %v1912 = vld [vmem:[%s1908 + $0x18] sm:$0xff]
        %s1913 = scalar_lea.vmem %s2, 11
        %v1914 = vld [vmem:[%s1913] sm:$0x1]
        %v1916 = vlaneseq
        %v1917 = vshrl.u32 %v1916, 7
        %v1918 = vsub.s32 0, %v1917
        %v1919 = vrot.slane %v1914, %v1918
        %1921 = vmatprep.subr.mxu0 0.0
        %1922 = vmatpush1.msra.mxu0 %v1909
        %1923 = vmatprep.subr.mxu0 0.0
        %1924 = vmatpush1.msra.mxu0 %v1910
        %1925 = vmatprep.subr.mxu0 0.0
        %1926 = vmatpush1.msra.mxu0 %v1911
        %1927 = vmatprep.subr.mxu0 0.0
        %1928 = vmatpush1.msra.mxu0 %v1912
        %1929 = vmatprep.subr.mxu0 0.0
        %1930 = vmatpush1.msra.mxu0 0.0
        %1931 = vmatprep.subr.mxu0 0.0
        %1932 = vmatpush1.msra.mxu0 0.0
        %1933 = vmatprep.subr.mxu0 0.0
        %1934 = vmatpush1.msra.mxu0 0.0
        %1935 = vmatprep.subr.mxu0 0.0
        %1936 = vmatpush1.msra.mxu0 0.0
        %1937 = vmatprep.subr.mxu0 0.0
        %1938 = vmatpush1.msra.mxu0 0.0
        %1939 = vmatprep.subr.mxu0 0.0
        %1940 = vmatpush1.msra.mxu0 0.0
        %1941 = vmatprep.subr.mxu0 0.0
        %1942 = vmatpush1.msra.mxu0 0.0
        %1943 = vmatprep.subr.mxu0 0.0
        %1944 = vmatpush1.msra.mxu0 0.0
        %1945 = vmatprep.subr.mxu0 0.0
        %1946 = vmatpush1.msra.mxu0 0.0
        %1947 = vmatprep.subr.mxu0 0.0
        %1948 = vmatpush1.msra.mxu0 0.0
        %1949 = vmatprep.subr.mxu0 0.0
        %1950 = vmatpush1.msra.mxu0 0.0
        %1951 = vmatprep.subr.mxu0 0.0
        %1952 = vmatpush1.msra.mxu0 0.0
        %1953 = vmatprep.subr.mxu0 0.0
        %1954 = vmatpush1.msra.mxu0 0.0
        %1955 = vmatprep.subr.mxu0 0.0
        %1956 = vmatpush1.msra.mxu0 0.0
        %1957 = vmatprep.subr.mxu0 0.0
        %1958 = vmatpush1.msra.mxu0 0.0
        %1959 = vmatprep.subr.mxu0 0.0
        %1960 = vmatpush1.msra.mxu0 0.0
        %1961 = vmatprep.subr.mxu0 0.0
        %1962 = vmatpush1.msra.mxu0 0.0
        %1963 = vmatprep.subr.mxu0 0.0
        %1964 = vmatpush1.msra.mxu0 0.0
        %1965 = vmatprep.subr.mxu0 0.0
        %1966 = vmatpush1.msra.mxu0 0.0
        %1967 = vmatprep.subr.mxu0 0.0
        %1968 = vmatpush1.msra.mxu0 0.0
        %1969 = vmatprep.subr.mxu0 0.0
        %1970 = vmatpush1.msra.mxu0 0.0
        %1971 = vmatprep.subr.mxu0 0.0
        %1972 = vmatpush1.msra.mxu0 0.0
        %1973 = vmatprep.subr.mxu0 0.0
        %1974 = vmatpush1.msra.mxu0 0.0
        %1975 = vmatprep.subr.mxu0 0.0
        %1976 = vmatpush1.msra.mxu0 0.0
        %1977 = vmatprep.subr.mxu0 0.0
        %1978 = vmatpush1.msra.mxu0 0.0
        %1979 = vmatprep.subr.mxu0 0.0
        %1980 = vmatpush1.msra.mxu0 0.0
        %1981 = vmatprep.subr.mxu0 0.0
        %1982 = vmatpush1.msra.mxu0 0.0
        %1983 = vmatprep.subr.mxu0 0.0
        %1984 = vmatpush1.msra.mxu0 0.0
        %1985 = vmatprep.mubr.f32.mxu0 0.0
        %1986 = vmatmul.mubr.f32.gmra.mrb[0].mxu0 %v289
        %v1987 = vpop.f32.mrb[0].mxu0
        %v1988 = vadd.f32 %v1919, %v1987
        %v1989 = vpop.f32.mrb[0].mxu0
        %1990 = vdwg.mxu0
        %v1992 = vsel %vm527, %v1822, 0
        %v1995 = vsel %vm527, %v1905, 0
        %1997 = vmatprep.subr.mxu0 0.0
        %1998 = vmatpush1.xpose.msra.mxu0 %v1995
        %1999 = vmatprep.subr.mxu0 0.0
        %2000 = vmatpush1.xpose.msra.mxu0 0.0
        %2001 = vmatprep.subr.mxu0 0.0
        %2002 = vmatpush1.xpose.msra.mxu0 0.0
        %2003 = vmatprep.subr.mxu0 0.0
        %2004 = vmatpush1.xpose.msra.mxu0 0.0
        %2005 = vmatprep.subr.mxu0 0.0
        %2006 = vmatpush1.xpose.msra.mxu0 0.0
        %2007 = vmatprep.subr.mxu0 0.0
        %2008 = vmatpush1.xpose.msra.mxu0 0.0
        %2009 = vmatprep.subr.mxu0 0.0
        %2010 = vmatpush1.xpose.msra.mxu0 0.0
        %2011 = vmatprep.subr.mxu0 0.0
        %2012 = vmatpush1.xpose.msra.mxu0 0.0
        %2013 = vmatprep.subr.mxu0 0.0
        %2014 = vmatpush1.xpose.msra.mxu0 0.0
        %2015 = vmatprep.subr.mxu0 0.0
        %2016 = vmatpush1.xpose.msra.mxu0 0.0
        %2017 = vmatprep.subr.mxu0 0.0
        %2018 = vmatpush1.xpose.msra.mxu0 0.0
        %2019 = vmatprep.subr.mxu0 0.0
        %2020 = vmatpush1.xpose.msra.mxu0 0.0
        %2021 = vmatprep.subr.mxu0 0.0
        %2022 = vmatpush1.xpose.msra.mxu0 0.0
        %2023 = vmatprep.subr.mxu0 0.0
        %2024 = vmatpush1.xpose.msra.mxu0 0.0
        %2025 = vmatprep.subr.mxu0 0.0
        %2026 = vmatpush1.xpose.msra.mxu0 0.0
        %2027 = vmatprep.subr.mxu0 0.0
        %2028 = vmatpush1.xpose.msra.mxu0 0.0
        %2029 = vmatprep.subr.mxu0 0.0
        %2030 = vmatpush1.xpose.msra.mxu0 0.0
        %2031 = vmatprep.subr.mxu0 0.0
        %2032 = vmatpush1.xpose.msra.mxu0 0.0
        %2033 = vmatprep.subr.mxu0 0.0
        %2034 = vmatpush1.xpose.msra.mxu0 0.0
        %2035 = vmatprep.subr.mxu0 0.0
        %2036 = vmatpush1.xpose.msra.mxu0 0.0
        %2037 = vmatprep.subr.mxu0 0.0
        %2038 = vmatpush1.xpose.msra.mxu0 0.0
        %2039 = vmatprep.subr.mxu0 0.0
        %2040 = vmatpush1.xpose.msra.mxu0 0.0
        %2041 = vmatprep.subr.mxu0 0.0
        %2042 = vmatpush1.xpose.msra.mxu0 0.0
        %2043 = vmatprep.subr.mxu0 0.0
        %2044 = vmatpush1.xpose.msra.mxu0 0.0
        %2045 = vmatprep.subr.mxu0 0.0
        %2046 = vmatpush1.xpose.msra.mxu0 0.0
        %2047 = vmatprep.subr.mxu0 0.0
        %2048 = vmatpush1.xpose.msra.mxu0 0.0
        %2049 = vmatprep.subr.mxu0 0.0
        %2050 = vmatpush1.xpose.msra.mxu0 0.0
        %2051 = vmatprep.subr.mxu0 0.0
        %2052 = vmatpush1.xpose.msra.mxu0 0.0
        %2053 = vmatprep.subr.mxu0 0.0
        %2054 = vmatpush1.xpose.msra.mxu0 0.0
        %2055 = vmatprep.subr.mxu0 0.0
        %2056 = vmatpush1.xpose.msra.mxu0 0.0
        %2057 = vmatprep.subr.mxu0 0.0
        %2058 = vmatpush1.xpose.msra.mxu0 0.0
        %2059 = vmatprep.subr.mxu0 0.0
        %2060 = vmatpush1.xpose.msra.mxu0 0.0
        %2061 = vmatprep.mubr.f32.mxu0 0.0
        %2062 = vmatmul.mubr.f32.gmra.mrb[0].mxu0 %v1992
        %v2063 = vpop.f32.mrb[0].mxu0
        %v2064 = vadd.f32 0.0, %v2063
        %v2065 = vpop.f32.mrb[0].mxu0
        %2066 = vdwg.mxu0
        %v2067 = vmul.f32 %v2064, 0.35355338
        %v2068 = vsel %vm527, %v2067, -inf
        %2069 = vmax.xlane.f32.xlu0 %v2068
        %v2070 = vpop.xlane.xlu0 %2069
        %v2071 = vsub.f32 %v2067, %v2070
        %v2072 = vmul.f32 %v2071, 1.442695
        %v2073 = vpow.pop %v2072
        %v2074 = vsel %vm527, %v2073, 0.0
        %2075 = vadd.xlane.f32.xlu0 %v2074
        %v2076 = vpop.xlane.xlu0 %2075
        %v2078 = vsel %vm527, %v2073, 0
        %2080 = vmatprep.subr.mxu0 0.0
        %2081 = vmatpush1.msra.mxu0 %v1988
        %2082 = vmatprep.subr.mxu0 0.0
        %2083 = vmatpush1.msra.mxu0 0.0
        %2084 = vmatprep.subr.mxu0 0.0
        %2085 = vmatpush1.msra.mxu0 0.0
        %2086 = vmatprep.subr.mxu0 0.0
        %2087 = vmatpush1.msra.mxu0 0.0
        %2088 = vmatprep.subr.mxu0 0.0
        %2089 = vmatpush1.msra.mxu0 0.0
        %2090 = vmatprep.subr.mxu0 0.0
        %2091 = vmatpush1.msra.mxu0 0.0
        %2092 = vmatprep.subr.mxu0 0.0
        %2093 = vmatpush1.msra.mxu0 0.0
        %2094 = vmatprep.subr.mxu0 0.0
        %2095 = vmatpush1.msra.mxu0 0.0
        %2096 = vmatprep.subr.mxu0 0.0
        %2097 = vmatpush1.msra.mxu0 0.0
        %2098 = vmatprep.subr.mxu0 0.0
        %2099 = vmatpush1.msra.mxu0 0.0
        %2100 = vmatprep.subr.mxu0 0.0
        %2101 = vmatpush1.msra.mxu0 0.0
        %2102 = vmatprep.subr.mxu0 0.0
        %2103 = vmatpush1.msra.mxu0 0.0
        %2104 = vmatprep.subr.mxu0 0.0
        %2105 = vmatpush1.msra.mxu0 0.0
        %2106 = vmatprep.subr.mxu0 0.0
        %2107 = vmatpush1.msra.mxu0 0.0
        %2108 = vmatprep.subr.mxu0 0.0
        %2109 = vmatpush1.msra.mxu0 0.0
        %2110 = vmatprep.subr.mxu0 0.0
        %2111 = vmatpush1.msra.mxu0 0.0
        %2112 = vmatprep.subr.mxu0 0.0
        %2113 = vmatpush1.msra.mxu0 0.0
        %2114 = vmatprep.subr.mxu0 0.0
        %2115 = vmatpush1.msra.mxu0 0.0
        %2116 = vmatprep.subr.mxu0 0.0
        %2117 = vmatpush1.msra.mxu0 0.0
        %2118 = vmatprep.subr.mxu0 0.0
        %2119 = vmatpush1.msra.mxu0 0.0
        %2120 = vmatprep.subr.mxu0 0.0
        %2121 = vmatpush1.msra.mxu0 0.0
        %2122 = vmatprep.subr.mxu0 0.0
        %2123 = vmatpush1.msra.mxu0 0.0
        %2124 = vmatprep.subr.mxu0 0.0
        %2125 = vmatpush1.msra.mxu0 0.0
        %2126 = vmatprep.subr.mxu0 0.0
        %2127 = vmatpush1.msra.mxu0 0.0
        %2128 = vmatprep.subr.mxu0 0.0
        %2129 = vmatpush1.msra.mxu0 0.0
        %2130 = vmatprep.subr.mxu0 0.0
        %2131 = vmatpush1.msra.mxu0 0.0
        %2132 = vmatprep.subr.mxu0 0.0
        %2133 = vmatpush1.msra.mxu0 0.0
        %2134 = vmatprep.subr.mxu0 0.0
        %2135 = vmatpush1.msra.mxu0 0.0
        %2136 = vmatprep.subr.mxu0 0.0
        %2137 = vmatpush1.msra.mxu0 0.0
        %2138 = vmatprep.subr.mxu0 0.0
        %2139 = vmatpush1.msra.mxu0 0.0
        %2140 = vmatprep.subr.mxu0 0.0
        %2141 = vmatpush1.msra.mxu0 0.0
        %2142 = vmatprep.subr.mxu0 0.0
        %2143 = vmatpush1.msra.mxu0 0.0
        %2144 = vmatprep.mubr.f32.mxu0 0.0
        %2145 = vmatmul.mubr.f32.gmra.mrb[0].mxu0 %v2078
        %v2146 = vpop.f32.mrb[0].mxu0
        %v2147 = vadd.f32 0.0, %v2146
        %v2148 = vpop.f32.mrb[0].mxu0
        %2149 = vdwg.mxu0
        %v2150 = vrcp.pop %v2076
        %v2151 = vmul.f32 %v2147, %v2150
        %s2152 = scalar_lea.vmem %s3, 24
        %v2153 = vld [vmem:[%s2152] sm:$0xff]
        %v2155 = vsel %vm527, %v2151, 0
        %2157 = vmatprep.subr.mxu0 0.0
        %2158 = vmatpush1.msra.mxu0 %v2153
        %2159 = vmatprep.subr.mxu0 0.0
        %2160 = vmatpush1.msra.mxu0 0.0
        %2161 = vmatprep.subr.mxu0 0.0
        %2162 = vmatpush1.msra.mxu0 0.0
        %2163 = vmatprep.subr.mxu0 0.0
        %2164 = vmatpush1.msra.mxu0 0.0
        %2165 = vmatprep.subr.mxu0 0.0
        %2166 = vmatpush1.msra.mxu0 0.0
        %2167 = vmatprep.subr.mxu0 0.0
        %2168 = vmatpush1.msra.mxu0 0.0
        %2169 = vmatprep.subr.mxu0 0.0
        %2170 = vmatpush1.msra.mxu0 0.0
        %2171 = vmatprep.subr.mxu0 0.0
        %2172 = vmatpush1.msra.mxu0 0.0
        %2173 = vmatprep.subr.mxu0 0.0
        %2174 = vmatpush1.msra.mxu0 0.0
        %2175 = vmatprep.subr.mxu0 0.0
        %2176 = vmatpush1.msra.mxu0 0.0
        %2177 = vmatprep.subr.mxu0 0.0
        %2178 = vmatpush1.msra.mxu0 0.0
        %2179 = vmatprep.subr.mxu0 0.0
        %2180 = vmatpush1.msra.mxu0 0.0
        %2181 = vmatprep.subr.mxu0 0.0
        %2182 = vmatpush1.msra.mxu0 0.0
        %2183 = vmatprep.subr.mxu0 0.0
        %2184 = vmatpush1.msra.mxu0 0.0
        %2185 = vmatprep.subr.mxu0 0.0
        %2186 = vmatpush1.msra.mxu0 0.0
        %2187 = vmatprep.subr.mxu0 0.0
        %2188 = vmatpush1.msra.mxu0 0.0
        %2189 = vmatprep.subr.mxu0 0.0
        %2190 = vmatpush1.msra.mxu0 0.0
        %2191 = vmatprep.subr.mxu0 0.0
        %2192 = vmatpush1.msra.mxu0 0.0
        %2193 = vmatprep.subr.mxu0 0.0
        %2194 = vmatpush1.msra.mxu0 0.0
        %2195 = vmatprep.subr.mxu0 0.0
        %2196 = vmatpush1.msra.mxu0 0.0
        %2197 = vmatprep.subr.mxu0 0.0
        %2198 = vmatpush1.msra.mxu0 0.0
        %2199 = vmatprep.subr.mxu0 0.0
        %2200 = vmatpush1.msra.mxu0 0.0
        %2201 = vmatprep.subr.mxu0 0.0
        %2202 = vmatpush1.msra.mxu0 0.0
        %2203 = vmatprep.subr.mxu0 0.0
        %2204 = vmatpush1.msra.mxu0 0.0
        %2205 = vmatprep.subr.mxu0 0.0
        %2206 = vmatpush1.msra.mxu0 0.0
        %2207 = vmatprep.subr.mxu0 0.0
        %2208 = vmatpush1.msra.mxu0 0.0
        %2209 = vmatprep.subr.mxu0 0.0
        %2210 = vmatpush1.msra.mxu0 0.0
        %2211 = vmatprep.subr.mxu0 0.0
        %2212 = vmatpush1.msra.mxu0 0.0
        %2213 = vmatprep.subr.mxu0 0.0
        %2214 = vmatpush1.msra.mxu0 0.0
        %2215 = vmatprep.subr.mxu0 0.0
        %2216 = vmatpush1.msra.mxu0 0.0
        %2217 = vmatprep.subr.mxu0 0.0
        %2218 = vmatpush1.msra.mxu0 0.0
        %2219 = vmatprep.subr.mxu0 0.0
        %2220 = vmatpush1.msra.mxu0 0.0
        %2221 = vmatprep.mubr.f32.mxu0 0.0
        %2222 = vmatmul.mubr.f32.gmra.mrb[0].mxu0 %v2155
        %v2223 = vpop.f32.mrb[0].mxu0
        %v2224 = vadd.f32 0.0, %v2223
        %v2225 = vpop.f32.mrb[0].mxu0
        %2226 = vdwg.mxu0
        %v2227 = vadd.f32 %v1741, %v2224
        %v2228 = vadd.f32 %v2227, %v274
        %v2229 = vsel %vm287, %v2228, 0.0
        %2230 = vadd.xlane.f32.xlu0 %v2229
        %v2231 = vpop.xlane.xlu0 %2230
        %v2232 = vrcp.pop 32.0
        %v2233 = vmul.f32 %v2231, %v2232
        %v2234 = vsub.f32 %v2228, %v2233
        %v2235 = vmul.f32 %v2234, %v2234
        %v2236 = vsel %vm287, %v2235, 0.0
        %2237 = vadd.xlane.f32.xlu0 %v2236
        %v2238 = vpop.xlane.xlu0 %2237
        %v2239 = vmul.f32 %v2238, %v2232
        %v2240 = vadd.f32 %v2239, 1e-12
        %v2241 = vrsqrt.pop %v2240
        %v2242 = vmul.f32 %v2234, %v2241
        %v2243 = vld [vmem:[%s5] sm:$0x1]
        %v2245 = vlaneseq
        %v2246 = vshrl.u32 %v2245, 7
        %v2247 = vsub.s32 0, %v2246
        %v2248 = vrot.slane %v2243, %v2247
        %v2250 = vmul.f32 %v2242, %v2248
        %v2251 = vld [vmem:[%s6] sm:$0x1]
        %v2253 = vlaneseq
        %v2254 = vshrl.u32 %v2253, 7
        %v2255 = vsub.s32 0, %v2254
        %v2256 = vrot.slane %v2251, %v2255
        %v2258 = vadd.f32 %v2250, %v2256
        %2259 = vst.msk [vmem:[%s269] sm:$0xff] %vm287, %v2258
        %s2260 = sand.u32 %s181, 1
        %s2261 = scalar_lea.sflag [#allocation3], %s2260
        %s2262 = sand.u32 %s181, 1
        %s2263 = smul.addr %s2262, 8
        %s2264 = scalar_lea.vmem [#allocation2], %s2263
        // Predicated region
        $region49: #{tpu_custom_call.1} parent=47 // pred_check
          %p2265 = pneg %p191
        $region50: #{tpu_custom_call.1} parent=47 // pred_check_branch
          %2267 = sbr.rel (%p2265) target = $region52
        $region51: #{tpu_custom_call.1} parent=47 // pred_region
          %s2269 = ssub.s32 128, 128
          %2270 = vsyncadd %s2261, %s2269
          %s2271 = smul.addr %s21, 128
          %s2272 = scalar_lea.hbm %s7, %s2271
          %s2274 = sshll.u32 %s2264, 4
          %s2275 = int_to_ptr.vmem [resolvable:$true] %s2274
          %2277 = dma.vmem_to_hbm [thread:$0]  %s2275, 128, %s2272, %s2261
        $region52: #{tpu_custom_call.1} parent=47 // pred_fallthru
          _
      $region48: #{tpu_custom_call.1} parent=5 // pred_fallthru
        _
      %p2278 = scmp.le.s32.totalorder 2, %s16
      // Predicated region
      $region53: #{tpu_custom_call.1} parent=5 // pred_check
        %p2279 = pneg %p2278
      $region54: #{tpu_custom_call.1} parent=5 // pred_check_branch
        %2281 = sbr.rel (%p2279) target = $region56
      $region55: #{tpu_custom_call.1} parent=5 // pred_region
        %s2282 = ssub.s32 %s16, 2
        // Predicated region
        $region57: #{tpu_custom_call.1} parent=55 // pred_check
          %p2283 = pneg %p197
        $region58: #{tpu_custom_call.1} parent=55 // pred_check_branch
          %2285 = sbr.rel (%p2283) target = $region60
        $region59: #{tpu_custom_call.1} parent=55 // pred_region
          %s2286 = sand.u32 %s182, 1
          %s2287 = scalar_lea.sflag [#allocation3], %s2286
          %s2288 = sand.u32 %s182, 1
          %s2289 = smul.addr %s2288, 8
          %s2290 = scalar_lea.vmem [#allocation2], %s2289
          %2291 = dma.done %s2287, 128
        $region60: #{tpu_custom_call.1} parent=55 // pred_fallthru
          _
      $region56: #{tpu_custom_call.1} parent=5 // pred_fallthru
        _
    $region6: #{tpu_custom_call.1} parent=1 // loop_footer
      %s20 = sadd.s32 1, %s16
    $region7: #{tpu_custom_call.1} parent=1 // loop_footer_branch
      %15 = sbr.rel target = $region3
    $region8: #{tpu_custom_call.1} parent=1 // loop_exit
      _
    %2292 = vsyncpa [#allocation3], 1
    %s2293 = scalar_lea.sflag [#allocation3], 1
    %2294 = vsyncpa %s2293, 1

</llo_original>
